<compile_context>
chip_gen: v7x
topology: tpu7x:2x2x1
jax: 0.10.0
libtpu: 0.0.40
codegen_flags: <defaults>
</compile_context>

<pallas_src>
import functools

import jax
import jax.numpy as jnp
from jax import lax
from jax.experimental import pallas as pl
from jax.experimental.pallas import tpu as pltpu


PREP_ORDER = [
    "w_in_cat", "b_in", "lb_in",
    "conv_w", "conv_b",
    "wx_dt", "wdt", "b_dt",
    "a", "wxb", "wxc", "d",
    "w_out_cat", "b_out", "lb_out",
]


def _silu(v):
    return v * jax.nn.sigmoid(v)


def adapted_mamba_kernel(
    x_ref,
    w_in_cat_ref, b_in_ref, lb_in_ref,
    conv_w_ref, conv_b_ref,
    wx_dt_ref, wdt_ref, b_dt_ref,
    a_ref, wxb_ref, wxc_ref, d_ref,
    w_out_cat_ref, b_out_ref, lb_out_ref,
    o_ref,
    dA_scr, dBu_scr, c_scr, y_scr, h_scr, tail_scr,
    *, Lc, D, E, N, K, UNROLL,
):
    f32 = jnp.float32
    bf16 = jnp.bfloat16
    E2 = 2 * E
    lc = pl.program_id(1)

    # New sequence (chunk 0): reset the cross-chunk carries.
    @pl.when(lc == 0)
    def _():
        h_scr[...] = jnp.zeros_like(h_scr)
        tail_scr[...] = jnp.zeros_like(tail_scr)

    x = x_ref[0]                                                     # (Lc, D) f32
    xb = x.astype(bf16)

    # ---- adapted in_proj: frozen Linear + sparsity-masked LoRA (fused) -------
    # w_in_cat = [W_in^T | A_in^T]  -> a single MXU pass over x; the LoRA
    # mask2*scaling is folded into lb_in on the host.  Dropout = identity.
    xc = jnp.dot(xb, w_in_cat_ref[...], preferred_element_type=f32)  # (Lc, 2E+r)
    xz = xc[:, :E2] + b_in_ref[...]
    xz = xz + jnp.dot(xc[:, E2:].astype(bf16), lb_in_ref[...],
                      preferred_element_type=f32)                    # (Lc, 2E)
    xs = xz[:, :E]
    res = xz[:, E:]

    # ---- depthwise causal conv1d + SiLU (K-1 row halo carried across chunks) -
    xs_ext = jnp.concatenate([tail_scr[...], xs], axis=0)            # (Lc+K-1, E)
    cw = conv_w_ref[...]                                             # (K, E)
    u = jnp.broadcast_to(conv_b_ref[...], (Lc, E))
    for k in range(K):
        u = u + xs_ext[k:k + Lc] * cw[k:k + 1, :]
    tail_scr[...] = xs_ext[Lc:Lc + K - 1]                 # halo for next chunk
    u = _silu(u)                                                     # (Lc, E)

    # ---- x_proj(dt) / dt_proj (dt_rank zero-padded to a lane-dense width) ----
    dt_in = jnp.dot(u.astype(bf16), wx_dt_ref[...],
                    preferred_element_type=f32)                      # (Lc, Rp)
    delta = jax.nn.softplus(
        jnp.dot(dt_in.astype(bf16), wdt_ref[...], preferred_element_type=f32)
        + b_dt_ref[...])                                             # (Lc, E)

    # ---- hoist exp(dt*A), dt*u*B and C out of the recurrence ------------------
    # All parallel over (l, n, e); built with broadcasts of the un-tiled (N, E)
    # constants (no rep matmul, no host tiling).
    d3 = delta[:, None, :]                                           # (Lc, 1, E)
    u3 = u[:, None, :]                                               # (Lc, 1, E)
    dA_scr[...] = jnp.exp(d3 * a_ref[...][None, :, :])               # (Lc, N, E)
    b3 = jnp.sum(u3 * wxb_ref[...][None, :, :], axis=2,
                 keepdims=True)                                      # (Lc, N, 1)
    dBu_scr[...] = (d3 * u3) * b3                                    # (Lc, N, E)
    c_scr[...] = jnp.sum(u3 * wxc_ref[...][None, :, :], axis=2,
                         keepdims=True)                              # (Lc, N, 1)

    # ---- selective scan: only the pure recurrence is sequential --------------
    # h is (N, E); 2 dependent VPU ops per step on the chain (independent per
    # vreg).  8x unrolled; one batched (UNROLL, E) y store per group.
    n_groups = Lc // UNROLL

    def scan_group(g, h):
        base = pl.multiple_of(g * UNROLL, UNROLL)
        rows = []
        for j in range(UNROLL):
            l = base + j
            h = dA_scr[l] * h + dBu_scr[l]
            rows.append(jnp.sum(h * c_scr[l], axis=0, keepdims=True))
        y_scr[pl.ds(base, UNROLL), :] = jnp.concatenate(rows, axis=0)
        return h

    h = lax.fori_loop(0, n_groups, scan_group, h_scr[...])
    h_scr[...] = h                                   # carry state to next chunk

    # ---- skip term + gate + adapted out_proj (fused) + block residual --------
    y = (y_scr[...] + d_ref[...] * u) * _silu(res)                   # (Lc, E)
    og = jnp.dot(y.astype(bf16), w_out_cat_ref[...],
                 preferred_element_type=f32)                         # (Lc, D+r)
    out = og[:, :D] + b_out_ref[...]
    out = out + jnp.dot(og[:, D:].astype(bf16), lb_out_ref[...],
                        preferred_element_type=f32)                  # (Lc, D)
    o_ref[0] = x + out


def _prepare_params(params, *, E, N, R, K, scaling):
    """Host-side weight folding: transposes, matmul fusion, LoRA mask/scale
    folding, dt_rank zero-padding and bf16 casts of every MXU operand."""
    f32, bf16 = jnp.float32, jnp.bfloat16
    Rp = ((R + 127) // 128) * 128                 # lane-dense dt_rank padding
    w_in = params["w_in"]                                      # (2E, D)
    lb_in_eff = params["lb_in"] * params["mask2"][0][:, None] * scaling  # (2E, r)
    wx = params["wx"]                                          # (R+2N, E)
    A = -jnp.exp(params["a_log"])                              # (E, N)
    wx_dt = jnp.zeros((E, Rp), f32).at[:, :R].set(wx[:R].T)
    wdt_p = jnp.zeros((Rp, E), f32).at[:R, :].set(params["wdt"].T)

    return {
        # fused [W_in^T | A_in^T]  (D, 2E + r)
        "w_in_cat": jnp.concatenate(
            [w_in.T, params["la_in"].T], axis=1).astype(bf16),
        "b_in": params["b_in"].astype(f32),                    # (1, 2E)
        "lb_in": lb_in_eff.T.astype(bf16),                     # (r, 2E)
        "conv_w": params["conv_w"].astype(f32),                # (K, E)
        "conv_b": params["conv_b"].astype(f32),                # (1, E)
        "wx_dt": wx_dt.astype(bf16),                           # (E, Rp)
        "wdt": wdt_p.astype(bf16),                             # (Rp, E)
        "b_dt": params["b_dt"].astype(f32),                    # (1, E)
        "a": A.T.astype(f32),                                  # (N, E)
        "wxb": wx[R:R + N].astype(f32),                        # (N, E)
        "wxc": wx[R + N:].astype(f32),                         # (N, E)
        "d": params["d"].astype(f32),                          # (1, E)
        # fused [W_out^T | A_out^T]  (E, D + r)
        "w_out_cat": jnp.concatenate(
            [params["w_out"].T, params["la_out"].T], axis=1).astype(bf16),
        "b_out": params["b_out"].astype(f32),                  # (1, D)
        "lb_out": (params["lb_out"].T * scaling).astype(bf16), # (r, D)
    }


def _pick_chunk(L, target=64):
    """Largest multiple-of-8 divisor of L that is <= target (or L itself)."""
    if L <= target:
        return L
    for c in range(target, 7, -8):
        if L % c == 0:
            return c
    return L


def adapted_mamba_block(x, params, *, E, N, R, K, scaling, chunk=64):
    B, L, D = x.shape
    CHUNK = _pick_chunk(L, chunk)
    assert L % CHUNK == 0 and CHUNK >= K - 1
    UNROLL = 8 if CHUNK % 8 == 0 else (4 if CHUNK % 4 == 0 else 1)
    prep = _prepare_params(params, E=E, N=N, R=R, K=K, scaling=scaling)
    kern = functools.partial(adapted_mamba_kernel, Lc=CHUNK, D=D, E=E, N=N,
                             K=K, UNROLL=UNROLL)

    def weight_spec(arr):
        nd = arr.ndim
        # Grid-invariant: fetched once; single-buffered so VMEM is not doubled.
        return pl.BlockSpec(arr.shape, lambda b, c, _nd=nd: (0,) * _nd,
                            pipeline_mode=pl.Buffered(buffer_count=1))

    in_specs = [pl.BlockSpec((1, CHUNK, D), lambda b, c: (b, c, 0))]
    in_specs += [weight_spec(prep[name]) for name in PREP_ORDER]

    fn = pl.pallas_call(
        kern,
        out_shape=jax.ShapeDtypeStruct((B, L, D), jnp.float32),
        grid=(B, L // CHUNK),
        in_specs=in_specs,
        out_specs=pl.BlockSpec((1, CHUNK, D), lambda b, c: (b, c, 0)),
        scratch_shapes=[
            pltpu.VMEM((CHUNK, N, E), jnp.float32),   # exp(dt*A)  per chunk
            pltpu.VMEM((CHUNK, N, E), jnp.float32),   # dt*u*B     per chunk
            pltpu.VMEM((CHUNK, N, 1), jnp.float32),   # C_l[n]     per chunk
            pltpu.VMEM((CHUNK, E), jnp.float32),      # scan output y
            pltpu.VMEM((N, E), jnp.float32),          # scan state (carried)
            pltpu.VMEM((K - 1, E), jnp.float32),      # conv halo  (carried)
        ],
        input_output_aliases={0: 0},   # residual written over x's HBM buffer
        compiler_params=pltpu.CompilerParams(
            dimension_semantics=("parallel", "arbitrary"),
            # Safe on every generation; raise it (and CHUNK) per target:
            # <=64 MiB physical on v7x, <=128 MiB on v5e/v6e.
            vmem_limit_bytes=32 * 1024 * 1024,
        ),
    )
    return jax.jit(fn)(x, *[prep[name] for name in PREP_ORDER])


# ---------------------------- pure-JAX reference -----------------------------
def ref_forward_single(x, p, *, E, N, R, K, scaling):
    L = x.shape[0]
    xz = x @ p["w_in"].T + p["b_in"][0]
    xz = xz + (x @ p["la_in"].T) @ p["lb_in"].T * p["mask2"][0] * scaling
    xs, res = xz[:, :E], xz[:, E:]
    padded = jnp.concatenate([jnp.zeros((K - 1, E)), xs], axis=0)
    u = p["conv_b"][0][None, :]
    for k in range(K):
        u = u + padded[k:k + L] * p["conv_w"][k][None, :]
    u = u * jax.nn.sigmoid(u)
    dbl = u @ p["wx"].T
    delta = jax.nn.softplus(dbl[:, :R] @ p["wdt"].T + p["b_dt"][0])
    Bm, Cm = dbl[:, R:R + N], dbl[:, R + N:]
    A = -jnp.exp(p["a_log"])

    def step(h, inp):
        d_l, u_l, B_l, C_l = inp
        h = jnp.exp(d_l[:, None] * A) * h + (d_l * u_l)[:, None] * B_l[None, :]
        y_l = (h * C_l[None, :]).sum(-1) + p["d"][0] * u_l
        return h, y_l

    _, y = jax.lax.scan(step, jnp.zeros((E, N)), (delta, u, Bm, Cm))
    y = y * (res * jax.nn.sigmoid(res))
    out = y @ p["w_out"].T + p["b_out"][0]
    out = out + (y @ p["la_out"].T) @ p["lb_out"].T * scaling
    return x + out


if __name__ == "__main__":
    # small shapes consistent with the module
    B, L, D = 2, 8, 32           # batch, seq, d_model
    E = 2 * D                    # d_inner = 64
    N = 16                       # d_state
    R = 2                        # dt_rank = ceil(d_model / 16)
    K = 4                        # d_conv
    rank = 16                    # SGHPEFTConfig.lora_rank
    alpha = rank * 2             # lora_alpha_factor = 2
    scaling = alpha / rank       # = 2.0

    key = jax.random.PRNGKey(0)
    ks = jax.random.split(key, 20)
    f32 = jnp.float32

    d_inner_mask = (jax.random.uniform(ks[0], (E,)) > 0.3).astype(f32)
    params = {
        "w_in":  0.05 * jax.random.normal(ks[1], (2 * E, D), f32),
        "b_in":  0.05 * jax.random.normal(ks[2], (1, 2 * E), f32),
        # NOTE: torch inits lora_B to zeros; random here so the LoRA path is exercised.
        "la_in": 0.02 * jax.random.normal(ks[3], (rank, D), f32),
        "lb_in": 0.02 * jax.random.normal(ks[4], (2 * E, rank), f32),
        "mask2": jnp.concatenate([d_inner_mask, d_inner_mask]).reshape(1, 2 * E),
        "conv_w": 0.2 * jax.random.normal(ks[5], (K, E), f32),
        "conv_b": 0.1 * jax.random.normal(ks[6], (1, E), f32),
        "wx":    0.05 * jax.random.normal(ks[7], (R + 2 * N, E), f32),
        "wdt":   0.1 * jax.random.normal(ks[8], (E, R), f32),
        "b_dt":  0.1 * jax.random.normal(ks[9], (1, E), f32),
        "a_log": jnp.log(jnp.broadcast_to(
            jnp.arange(1, N + 1, dtype=f32)[None, :], (E, N))).copy(),
        "d":     jnp.ones((1, E), f32),
        "w_out": 0.05 * jax.random.normal(ks[10], (D, E), f32),
        "b_out": 0.05 * jax.random.normal(ks[11], (1, D), f32),
        "la_out": 0.02 * jax.random.normal(ks[12], (rank, E), f32),
        "lb_out": 0.02 * jax.random.normal(ks[13], (D, rank), f32),
    }

    x = jax.random.normal(ks[14], (B, L, D), f32)

    # reference first (pure JAX f32), then the Pallas kernel (bf16 MXU operands,
    # f32 accumulation / scan math).
    ref = jax.vmap(
        lambda xi: ref_forward_single(xi, params, E=E, N=N, R=R, K=K,
                                      scaling=scaling))(x)
    ref = jax.block_until_ready(ref)

    out = adapted_mamba_block(x, params, E=E, N=N, R=R, K=K, scaling=scaling)
    out = jax.block_until_ready(out)

    assert out.shape == (B, L, D)
    assert jnp.allclose(out, ref, atol=2e-2, rtol=2e-2), (
        float(jnp.max(jnp.abs(out - ref))))

    print("KERNEL_OK")
</pallas_src>

<mosaic_0001>
module attributes {stable_mosaic.version = 11 : i64} {
  func.func @adapted_mamba_kernel(%arg0: i32, %arg1: i32, %arg2: memref<1x8x32xf32, #tpu.memory_space<vmem>>, %arg3: memref<32x144xbf16, #tpu.memory_space<vmem>>, %arg4: memref<1x128xf32, #tpu.memory_space<vmem>>, %arg5: memref<16x128xbf16, #tpu.memory_space<vmem>>, %arg6: memref<4x64xf32, #tpu.memory_space<vmem>>, %arg7: memref<1x64xf32, #tpu.memory_space<vmem>>, %arg8: memref<64x128xbf16, #tpu.memory_space<vmem>>, %arg9: memref<128x64xbf16, #tpu.memory_space<vmem>>, %arg10: memref<1x64xf32, #tpu.memory_space<vmem>>, %arg11: memref<16x64xf32, #tpu.memory_space<vmem>>, %arg12: memref<16x64xf32, #tpu.memory_space<vmem>>, %arg13: memref<16x64xf32, #tpu.memory_space<vmem>>, %arg14: memref<1x64xf32, #tpu.memory_space<vmem>>, %arg15: memref<64x48xbf16, #tpu.memory_space<vmem>>, %arg16: memref<1x32xf32, #tpu.memory_space<vmem>>, %arg17: memref<16x32xbf16, #tpu.memory_space<vmem>>, %arg18: memref<1x8x32xf32, #tpu.memory_space<vmem>>, %arg19: memref<8x16x64xf32, #tpu.memory_space<vmem>>, %arg20: memref<8x16x64xf32, #tpu.memory_space<vmem>>, %arg21: memref<8x16x1xf32, #tpu.memory_space<vmem>>, %arg22: memref<8x64xf32, #tpu.memory_space<vmem>>, %arg23: memref<16x64xf32, #tpu.memory_space<vmem>>, %arg24: memref<3x64xf32, #tpu.memory_space<vmem>>) attributes {dimension_semantics = [#tpu.dimension_semantics<parallel>, #tpu.dimension_semantics<arbitrary>], iteration_bounds = array<i64: 2, 1>, scalar_prefetch = 0 : i64, scratch_operands = 6 : i64, tpu.core_type = #tpu.core_type<tc>, window_params = [{transform_indices = @transform_0, window_bounds = array<i64: 1, 8, 32>}, {pipeline_mode = #tpu.pipeline_mode<synchronous>, transform_indices = @transform_1, window_bounds = array<i64: 32, 144>}, {pipeline_mode = #tpu.pipeline_mode<synchronous>, transform_indices = @transform_2, window_bounds = array<i64: 1, 128>}, {pipeline_mode = #tpu.pipeline_mode<synchronous>, transform_indices = @transform_3, window_bounds = array<i64: 16, 128>}, {pipeline_mode = #tpu.pipeline_mode<synchronous>, transform_indices = @transform_4, window_bounds = array<i64: 4, 64>}, {pipeline_mode = #tpu.pipeline_mode<synchronous>, transform_indices = @transform_5, window_bounds = array<i64: 1, 64>}, {pipeline_mode = #tpu.pipeline_mode<synchronous>, transform_indices = @transform_6, window_bounds = array<i64: 64, 128>}, {pipeline_mode = #tpu.pipeline_mode<synchronous>, transform_indices = @transform_7, window_bounds = array<i64: 128, 64>}, {pipeline_mode = #tpu.pipeline_mode<synchronous>, transform_indices = @transform_8, window_bounds = array<i64: 1, 64>}, {pipeline_mode = #tpu.pipeline_mode<synchronous>, transform_indices = @transform_9, window_bounds = array<i64: 16, 64>}, {pipeline_mode = #tpu.pipeline_mode<synchronous>, transform_indices = @transform_10, window_bounds = array<i64: 16, 64>}, {pipeline_mode = #tpu.pipeline_mode<synchronous>, transform_indices = @transform_11, window_bounds = array<i64: 16, 64>}, {pipeline_mode = #tpu.pipeline_mode<synchronous>, transform_indices = @transform_12, window_bounds = array<i64: 1, 64>}, {pipeline_mode = #tpu.pipeline_mode<synchronous>, transform_indices = @transform_13, window_bounds = array<i64: 64, 48>}, {pipeline_mode = #tpu.pipeline_mode<synchronous>, transform_indices = @transform_14, window_bounds = array<i64: 1, 32>}, {pipeline_mode = #tpu.pipeline_mode<synchronous>, transform_indices = @transform_15, window_bounds = array<i64: 16, 32>}, {transform_indices = @transform_16, window_bounds = array<i64: 1, 8, 32>}]} {
    %c0_i32 = arith.constant 0 : i32
    %0 = arith.cmpi eq, %arg1, %c0_i32 : i32
    %1 = arith.extui %0 : i1 to i32
    %c0_i32_0 = arith.constant 0 : i32
    %2 = arith.cmpi ne, %1, %c0_i32_0 : i32
    scf.if %2 {
      %cst_126 = arith.constant 0.000000e+00 : f32
      %268 = vector.broadcast %cst_126 : f32 to vector<16x64xf32>
      %c0_127 = arith.constant 0 : index
      %c0_128 = arith.constant 0 : index
      %269 = vector.load %arg23[%c0_127, %c0_128] : memref<16x64xf32, #tpu.memory_space<vmem>>, vector<16x64xf32>
      tpu.vector_store %arg23[%c0_127, %c0_128], %268 {strides = array<i32>} : memref<16x64xf32, #tpu.memory_space<vmem>>, vector<16x64xf32>,
      %cst_129 = arith.constant 0.000000e+00 : f32
      %270 = vector.broadcast %cst_129 : f32 to vector<3x64xf32>
      %c0_130 = arith.constant 0 : index
      %c0_131 = arith.constant 0 : index
      %271 = vector.load %arg24[%c0_130, %c0_131] : memref<3x64xf32, #tpu.memory_space<vmem>>, vector<3x64xf32>
      tpu.vector_store %arg24[%c0_130, %c0_131], %270 {strides = array<i32>} : memref<3x64xf32, #tpu.memory_space<vmem>>, vector<3x64xf32>,
    } else {
    }
    %c0 = arith.constant 0 : index
    %c0_1 = arith.constant 0 : index
    %c0_2 = arith.constant 0 : index
    %3 = vector.load %arg2[%c0, %c0_1, %c0_2] : memref<1x8x32xf32, #tpu.memory_space<vmem>>, vector<1x8x32xf32>
    %4 = vector.shape_cast %3 : vector<1x8x32xf32> to vector<8x32xf32>
    %5 = arith.truncf %4 : vector<8x32xf32> to vector<8x32xbf16>
    %c0_3 = arith.constant 0 : index
    %c0_4 = arith.constant 0 : index
    %6 = vector.load %arg3[%c0_3, %c0_4] : memref<32x144xbf16, #tpu.memory_space<vmem>>, vector<32x144xbf16>
    %cst = arith.constant dense<0.000000e+00> : vector<8x144xf32>
    %7 = tpu.matmul %5, %6, %cst {dimension_numbers = #tpu.dot_dimension_numbers<[1], [0], [0], [1], [0, 0, 1, 1], [], []>} : vector<8x32xbf16>, vector<32x144xbf16>, vector<8x144xf32> -> vector<8x144xf32>
    %8 = vector.extract_strided_slice %7 {offsets = [0, 0], sizes = [8, 128], strides = [1, 1]} : vector<8x144xf32> to vector<8x128xf32>
    %c0_5 = arith.constant 0 : index
    %c0_6 = arith.constant 0 : index
    %9 = vector.load %arg4[%c0_5, %c0_6] : memref<1x128xf32, #tpu.memory_space<vmem>>, vector<1x128xf32>
    %10 = vector.broadcast %9 : vector<1x128xf32> to vector<8x128xf32>
    %11 = arith.addf %8, %10 : vector<8x128xf32>
    %12 = vector.extract_strided_slice %7 {offsets = [0, 128], sizes = [8, 16], strides = [1, 1]} : vector<8x144xf32> to vector<8x16xf32>
    %13 = arith.truncf %12 : vector<8x16xf32> to vector<8x16xbf16>
    %c0_7 = arith.constant 0 : index
    %c0_8 = arith.constant 0 : index
    %14 = vector.load %arg5[%c0_7, %c0_8] : memref<16x128xbf16, #tpu.memory_space<vmem>>, vector<16x128xbf16>
    %cst_9 = arith.constant dense<0.000000e+00> : vector<8x128xf32>
    %15 = tpu.matmul %13, %14, %cst_9 {dimension_numbers = #tpu.dot_dimension_numbers<[1], [0], [0], [1], [0, 0, 1, 1], [], []>} : vector<8x16xbf16>, vector<16x128xbf16>, vector<8x128xf32> -> vector<8x128xf32>
    %16 = arith.addf %11, %15 : vector<8x128xf32>
    %17 = vector.extract_strided_slice %16 {offsets = [0, 0], sizes = [8, 64], strides = [1, 1]} : vector<8x128xf32> to vector<8x64xf32>
    %18 = vector.extract_strided_slice %16 {offsets = [0, 64], sizes = [8, 64], strides = [1, 1]} : vector<8x128xf32> to vector<8x64xf32>
    %c0_10 = arith.constant 0 : index
    %c0_11 = arith.constant 0 : index
    %19 = vector.load %arg24[%c0_10, %c0_11] : memref<3x64xf32, #tpu.memory_space<vmem>>, vector<3x64xf32>
    %20 = tpu.concatenate %19, %17 in 0 : vector<3x64xf32>, vector<8x64xf32> -> vector<11x64xf32>
    %c0_12 = arith.constant 0 : index
    %c0_13 = arith.constant 0 : index
    %21 = vector.load %arg6[%c0_12, %c0_13] : memref<4x64xf32, #tpu.memory_space<vmem>>, vector<4x64xf32>
    %c0_14 = arith.constant 0 : index
    %c0_15 = arith.constant 0 : index
    %22 = vector.load %arg7[%c0_14, %c0_15] : memref<1x64xf32, #tpu.memory_space<vmem>>, vector<1x64xf32>
    %23 = vector.shape_cast %22 : vector<1x64xf32> to vector<1x64xf32>
    %24 = vector.broadcast %23 : vector<1x64xf32> to vector<8x64xf32>
    %25 = vector.extract_strided_slice %20 {offsets = [0, 0], sizes = [8, 64], strides = [1, 1]} : vector<11x64xf32> to vector<8x64xf32>
    %26 = vector.extract_strided_slice %21 {offsets = [0, 0], sizes = [1, 64], strides = [1, 1]} : vector<4x64xf32> to vector<1x64xf32>
    %27 = vector.broadcast %26 : vector<1x64xf32> to vector<8x64xf32>
    %28 = arith.mulf %25, %27 : vector<8x64xf32>
    %29 = arith.addf %24, %28 : vector<8x64xf32>
    %30 = vector.extract_strided_slice %20 {offsets = [1, 0], sizes = [8, 64], strides = [1, 1]} : vector<11x64xf32> to vector<8x64xf32>
    %31 = vector.extract_strided_slice %21 {offsets = [1, 0], sizes = [1, 64], strides = [1, 1]} : vector<4x64xf32> to vector<1x64xf32>
    %32 = vector.broadcast %31 : vector<1x64xf32> to vector<8x64xf32>
    %33 = arith.mulf %30, %32 : vector<8x64xf32>
    %34 = arith.addf %29, %33 : vector<8x64xf32>
    %35 = vector.extract_strided_slice %20 {offsets = [2, 0], sizes = [8, 64], strides = [1, 1]} : vector<11x64xf32> to vector<8x64xf32>
    %36 = vector.extract_strided_slice %21 {offsets = [2, 0], sizes = [1, 64], strides = [1, 1]} : vector<4x64xf32> to vector<1x64xf32>
    %37 = vector.broadcast %36 : vector<1x64xf32> to vector<8x64xf32>
    %38 = arith.mulf %35, %37 : vector<8x64xf32>
    %39 = arith.addf %34, %38 : vector<8x64xf32>
    %40 = vector.extract_strided_slice %20 {offsets = [3, 0], sizes = [8, 64], strides = [1, 1]} : vector<11x64xf32> to vector<8x64xf32>
    %41 = vector.extract_strided_slice %21 {offsets = [3, 0], sizes = [1, 64], strides = [1, 1]} : vector<4x64xf32> to vector<1x64xf32>
    %42 = vector.broadcast %41 : vector<1x64xf32> to vector<8x64xf32>
    %43 = arith.mulf %40, %42 : vector<8x64xf32>
    %44 = arith.addf %39, %43 : vector<8x64xf32>
    %45 = vector.extract_strided_slice %20 {offsets = [8, 0], sizes = [3, 64], strides = [1, 1]} : vector<11x64xf32> to vector<3x64xf32>
    %c0_16 = arith.constant 0 : index
    %c0_17 = arith.constant 0 : index
    %46 = vector.load %arg24[%c0_16, %c0_17] : memref<3x64xf32, #tpu.memory_space<vmem>>, vector<3x64xf32>
    tpu.vector_store %arg24[%c0_16, %c0_17], %45 {strides = array<i32>} : memref<3x64xf32, #tpu.memory_space<vmem>>, vector<3x64xf32>,
    %47 = arith.negf %44 : vector<8x64xf32>
    %48 = math.exp %47 : vector<8x64xf32>
    %cst_18 = arith.constant 1.000000e+00 : f32
    %49 = vector.broadcast %cst_18 : f32 to vector<8x64xf32>
    %50 = arith.addf %49, %48 : vector<8x64xf32>
    %51 = arith.divf %49, %50 : vector<8x64xf32>
    %52 = arith.mulf %44, %51 : vector<8x64xf32>
    %53 = arith.truncf %52 : vector<8x64xf32> to vector<8x64xbf16>
    %c0_19 = arith.constant 0 : index
    %c0_20 = arith.constant 0 : index
    %54 = vector.load %arg8[%c0_19, %c0_20] : memref<64x128xbf16, #tpu.memory_space<vmem>>, vector<64x128xbf16>
    %cst_21 = arith.constant dense<0.000000e+00> : vector<8x128xf32>
    %55 = tpu.matmul %53, %54, %cst_21 {dimension_numbers = #tpu.dot_dimension_numbers<[1], [0], [0], [1], [0, 0, 1, 1], [], []>} : vector<8x64xbf16>, vector<64x128xbf16>, vector<8x128xf32> -> vector<8x128xf32>
    %56 = arith.truncf %55 : vector<8x128xf32> to vector<8x128xbf16>
    %c0_22 = arith.constant 0 : index
    %c0_23 = arith.constant 0 : index
    %57 = vector.load %arg9[%c0_22, %c0_23] : memref<128x64xbf16, #tpu.memory_space<vmem>>, vector<128x64xbf16>
    %cst_24 = arith.constant dense<0.000000e+00> : vector<8x64xf32>
    %58 = tpu.matmul %56, %57, %cst_24 {dimension_numbers = #tpu.dot_dimension_numbers<[1], [0], [0], [1], [0, 0, 1, 1], [], []>} : vector<8x128xbf16>, vector<128x64xbf16>, vector<8x64xf32> -> vector<8x64xf32>
    %c0_25 = arith.constant 0 : index
    %c0_26 = arith.constant 0 : index
    %59 = vector.load %arg10[%c0_25, %c0_26] : memref<1x64xf32, #tpu.memory_space<vmem>>, vector<1x64xf32>
    %60 = vector.broadcast %59 : vector<1x64xf32> to vector<8x64xf32>
    %61 = arith.addf %58, %60 : vector<8x64xf32>
    %cst_27 = arith.constant 0.000000e+00 : f32
    %62 = vector.broadcast %cst_27 : f32 to vector<8x64xf32>
    %63 = arith.maximumf %61, %62 : vector<8x64xf32>
    %64 = vector.broadcast %cst_27 : f32 to vector<8x64xf32>
    %65 = arith.subf %61, %64 : vector<8x64xf32>
    %66 = arith.cmpf one, %65, %65 : vector<8x64xf32>
    %67 = vector.broadcast %cst_27 : f32 to vector<8x64xf32>
    %68 = arith.addf %61, %67 : vector<8x64xf32>
    %69 = math.absf %65 : vector<8x64xf32>
    %cst_28 = arith.constant 0.000000e+00 : f32
    %70 = vector.broadcast %cst_28 : f32 to vector<8x64xf32>
    %71 = arith.subf %70, %69 : vector<8x64xf32>
    %72 = math.exp %71 : vector<8x64xf32>
    %73 = math.log1p %72 : vector<8x64xf32>
    %74 = arith.addf %63, %73 : vector<8x64xf32>
    %75 = arith.select %66, %68, %74 : vector<8x64xi1>, vector<8x64xf32>
    %76 = vector.shape_cast %75 : vector<8x64xf32> to vector<8x1x64xf32>
    %77 = vector.shape_cast %52 : vector<8x64xf32> to vector<8x1x64xf32>
    %c0_29 = arith.constant 0 : index
    %c0_30 = arith.constant 0 : index
    %78 = vector.load %arg11[%c0_29, %c0_30] : memref<16x64xf32, #tpu.memory_space<vmem>>, vector<16x64xf32>
    %79 = vector.shape_cast %78 : vector<16x64xf32> to vector<1x16x64xf32>
    %80 = vector.broadcast %76 : vector<8x1x64xf32> to vector<8x16x64xf32>
    %81 = vector.broadcast %79 : vector<1x16x64xf32> to vector<8x16x64xf32>
    %82 = arith.mulf %80, %81 : vector<8x16x64xf32>
    %83 = math.exp %82 : vector<8x16x64xf32>
    %c0_31 = arith.constant 0 : index
    %c0_32 = arith.constant 0 : index
    %c0_33 = arith.constant 0 : index
    %84 = vector.load %arg19[%c0_31, %c0_32, %c0_33] : memref<8x16x64xf32, #tpu.memory_space<vmem>>, vector<8x16x64xf32>
    tpu.vector_store %arg19[%c0_31, %c0_32, %c0_33], %83 {strides = array<i32>} : memref<8x16x64xf32, #tpu.memory_space<vmem>>, vector<8x16x64xf32>,
    %c0_34 = arith.constant 0 : index
    %c0_35 = arith.constant 0 : index
    %85 = vector.load %arg12[%c0_34, %c0_35] : memref<16x64xf32, #tpu.memory_space<vmem>>, vector<16x64xf32>
    %86 = vector.shape_cast %85 : vector<16x64xf32> to vector<1x16x64xf32>
    %87 = vector.broadcast %77 : vector<8x1x64xf32> to vector<8x16x64xf32>
    %88 = vector.broadcast %86 : vector<1x16x64xf32> to vector<8x16x64xf32>
    %89 = arith.mulf %87, %88 : vector<8x16x64xf32>
    %cst_36 = arith.constant dense<0.000000e+00> : vector<8x16xf32>
    %90 = vector.multi_reduction <add>, %89, %cst_36 [2] : vector<8x16x64xf32> to vector<8x16xf32>
    %91 = vector.shape_cast %90 : vector<8x16xf32> to vector<8x16x1xf32>
    %92 = arith.mulf %76, %77 : vector<8x1x64xf32>
    %93 = vector.broadcast %92 : vector<8x1x64xf32> to vector<8x16x64xf32>
    %94 = vector.broadcast %91 : vector<8x16x1xf32> to vector<8x16x64xf32>
    %95 = arith.mulf %93, %94 : vector<8x16x64xf32>
    %c0_37 = arith.constant 0 : index
    %c0_38 = arith.constant 0 : index
    %c0_39 = arith.constant 0 : index
    %96 = vector.load %arg20[%c0_37, %c0_38, %c0_39] : memref<8x16x64xf32, #tpu.memory_space<vmem>>, vector<8x16x64xf32>
    tpu.vector_store %arg20[%c0_37, %c0_38, %c0_39], %95 {strides = array<i32>} : memref<8x16x64xf32, #tpu.memory_space<vmem>>, vector<8x16x64xf32>,
    %c0_40 = arith.constant 0 : index
    %c0_41 = arith.constant 0 : index
    %97 = vector.load %arg13[%c0_40, %c0_41] : memref<16x64xf32, #tpu.memory_space<vmem>>, vector<16x64xf32>
    %98 = vector.shape_cast %97 : vector<16x64xf32> to vector<1x16x64xf32>
    %99 = vector.broadcast %77 : vector<8x1x64xf32> to vector<8x16x64xf32>
    %100 = vector.broadcast %98 : vector<1x16x64xf32> to vector<8x16x64xf32>
    %101 = arith.mulf %99, %100 : vector<8x16x64xf32>
    %cst_42 = arith.constant dense<0.000000e+00> : vector<8x16xf32>
    %102 = vector.multi_reduction <add>, %101, %cst_42 [2] : vector<8x16x64xf32> to vector<8x16xf32>
    %103 = vector.shape_cast %102 : vector<8x16xf32> to vector<8x16x1xf32>
    %c0_43 = arith.constant 0 : index
    %c0_44 = arith.constant 0 : index
    %c0_45 = arith.constant 0 : index
    %104 = vector.load %arg21[%c0_43, %c0_44, %c0_45] : memref<8x16x1xf32, #tpu.memory_space<vmem>>, vector<8x16x1xf32>
    tpu.vector_store %arg21[%c0_43, %c0_44, %c0_45], %103 {strides = array<i32>} : memref<8x16x1xf32, #tpu.memory_space<vmem>>, vector<8x16x1xf32>,
    %c0_46 = arith.constant 0 : index
    %c0_47 = arith.constant 0 : index
    %105 = vector.load %arg23[%c0_46, %c0_47] : memref<16x64xf32, #tpu.memory_space<vmem>>, vector<16x64xf32>
    %c0_i32_48 = arith.constant 0 : i32
    %c8_i32 = arith.constant 8 : i32
    %106 = arith.muli %c0_i32_48, %c8_i32 : i32
    %107 = tpu.assume_multiple %106, 8 : i32
    %c0_i32_49 = arith.constant 0 : i32
    %108 = arith.addi %107, %c0_i32_49 : i32
    %109 = arith.index_cast %108 : i32 to index
    %c0_50 = arith.constant 0 : index
    %c0_51 = arith.constant 0 : index
    %110 = vector.load %arg19[%109, %c0_50, %c0_51] : memref<8x16x64xf32, #tpu.memory_space<vmem>>, vector<1x16x64xf32>
    %111 = vector.shape_cast %110 : vector<1x16x64xf32> to vector<16x64xf32>
    %112 = arith.mulf %111, %105 : vector<16x64xf32>
    %113 = arith.index_cast %108 : i32 to index
    %c0_52 = arith.constant 0 : index
    %c0_53 = arith.constant 0 : index
    %114 = vector.load %arg20[%113, %c0_52, %c0_53] : memref<8x16x64xf32, #tpu.memory_space<vmem>>, vector<1x16x64xf32>
    %115 = vector.shape_cast %114 : vector<1x16x64xf32> to vector<16x64xf32>
    %116 = arith.addf %112, %115 : vector<16x64xf32>
    %117 = arith.index_cast %108 : i32 to index
    %c0_54 = arith.constant 0 : index
    %c0_55 = arith.constant 0 : index
    %118 = vector.load %arg21[%117, %c0_54, %c0_55] : memref<8x16x1xf32, #tpu.memory_space<vmem>>, vector<1x16x1xf32>
    %119 = vector.shape_cast %118 : vector<1x16x1xf32> to vector<16x1xf32>
    %120 = vector.broadcast %119 : vector<16x1xf32> to vector<16x64xf32>
    %121 = arith.mulf %116, %120 : vector<16x64xf32>
    %cst_56 = arith.constant dense<0.000000e+00> : vector<64xf32>
    %122 = vector.multi_reduction <add>, %121, %cst_56 [0] : vector<16x64xf32> to vector<64xf32>
    %123 = vector.shape_cast %122 : vector<64xf32> to vector<1x64xf32>
    %c1_i32 = arith.constant 1 : i32
    %124 = arith.addi %107, %c1_i32 : i32
    %125 = arith.index_cast %124 : i32 to index
    %c0_57 = arith.constant 0 : index
    %c0_58 = arith.constant 0 : index
    %126 = vector.load %arg19[%125, %c0_57, %c0_58] : memref<8x16x64xf32, #tpu.memory_space<vmem>>, vector<1x16x64xf32>
    %127 = vector.shape_cast %126 : vector<1x16x64xf32> to vector<16x64xf32>
    %128 = arith.mulf %127, %116 : vector<16x64xf32>
    %129 = arith.index_cast %124 : i32 to index
    %c0_59 = arith.constant 0 : index
    %c0_60 = arith.constant 0 : index
    %130 = vector.load %arg20[%129, %c0_59, %c0_60] : memref<8x16x64xf32, #tpu.memory_space<vmem>>, vector<1x16x64xf32>
    %131 = vector.shape_cast %130 : vector<1x16x64xf32> to vector<16x64xf32>
    %132 = arith.addf %128, %131 : vector<16x64xf32>
    %133 = arith.index_cast %124 : i32 to index
    %c0_61 = arith.constant 0 : index
    %c0_62 = arith.constant 0 : index
    %134 = vector.load %arg21[%133, %c0_61, %c0_62] : memref<8x16x1xf32, #tpu.memory_space<vmem>>, vector<1x16x1xf32>
    %135 = vector.shape_cast %134 : vector<1x16x1xf32> to vector<16x1xf32>
    %136 = vector.broadcast %135 : vector<16x1xf32> to vector<16x64xf32>
    %137 = arith.mulf %132, %136 : vector<16x64xf32>
    %cst_63 = arith.constant dense<0.000000e+00> : vector<64xf32>
    %138 = vector.multi_reduction <add>, %137, %cst_63 [0] : vector<16x64xf32> to vector<64xf32>
    %139 = vector.shape_cast %138 : vector<64xf32> to vector<1x64xf32>
    %c2_i32 = arith.constant 2 : i32
    %140 = arith.addi %107, %c2_i32 : i32
    %141 = arith.index_cast %140 : i32 to index
    %c0_64 = arith.constant 0 : index
    %c0_65 = arith.constant 0 : index
    %142 = vector.load %arg19[%141, %c0_64, %c0_65] : memref<8x16x64xf32, #tpu.memory_space<vmem>>, vector<1x16x64xf32>
    %143 = vector.shape_cast %142 : vector<1x16x64xf32> to vector<16x64xf32>
    %144 = arith.mulf %143, %132 : vector<16x64xf32>
    %145 = arith.index_cast %140 : i32 to index
    %c0_66 = arith.constant 0 : index
    %c0_67 = arith.constant 0 : index
    %146 = vector.load %arg20[%145, %c0_66, %c0_67] : memref<8x16x64xf32, #tpu.memory_space<vmem>>, vector<1x16x64xf32>
    %147 = vector.shape_cast %146 : vector<1x16x64xf32> to vector<16x64xf32>
    %148 = arith.addf %144, %147 : vector<16x64xf32>
    %149 = arith.index_cast %140 : i32 to index
    %c0_68 = arith.constant 0 : index
    %c0_69 = arith.constant 0 : index
    %150 = vector.load %arg21[%149, %c0_68, %c0_69] : memref<8x16x1xf32, #tpu.memory_space<vmem>>, vector<1x16x1xf32>
    %151 = vector.shape_cast %150 : vector<1x16x1xf32> to vector<16x1xf32>
    %152 = vector.broadcast %151 : vector<16x1xf32> to vector<16x64xf32>
    %153 = arith.mulf %148, %152 : vector<16x64xf32>
    %cst_70 = arith.constant dense<0.000000e+00> : vector<64xf32>
    %154 = vector.multi_reduction <add>, %153, %cst_70 [0] : vector<16x64xf32> to vector<64xf32>
    %155 = vector.shape_cast %154 : vector<64xf32> to vector<1x64xf32>
    %c3_i32 = arith.constant 3 : i32
    %156 = arith.addi %107, %c3_i32 : i32
    %157 = arith.index_cast %156 : i32 to index
    %c0_71 = arith.constant 0 : index
    %c0_72 = arith.constant 0 : index
    %158 = vector.load %arg19[%157, %c0_71, %c0_72] : memref<8x16x64xf32, #tpu.memory_space<vmem>>, vector<1x16x64xf32>
    %159 = vector.shape_cast %158 : vector<1x16x64xf32> to vector<16x64xf32>
    %160 = arith.mulf %159, %148 : vector<16x64xf32>
    %161 = arith.index_cast %156 : i32 to index
    %c0_73 = arith.constant 0 : index
    %c0_74 = arith.constant 0 : index
    %162 = vector.load %arg20[%161, %c0_73, %c0_74] : memref<8x16x64xf32, #tpu.memory_space<vmem>>, vector<1x16x64xf32>
    %163 = vector.shape_cast %162 : vector<1x16x64xf32> to vector<16x64xf32>
    %164 = arith.addf %160, %163 : vector<16x64xf32>
    %165 = arith.index_cast %156 : i32 to index
    %c0_75 = arith.constant 0 : index
    %c0_76 = arith.constant 0 : index
    %166 = vector.load %arg21[%165, %c0_75, %c0_76] : memref<8x16x1xf32, #tpu.memory_space<vmem>>, vector<1x16x1xf32>
    %167 = vector.shape_cast %166 : vector<1x16x1xf32> to vector<16x1xf32>
    %168 = vector.broadcast %167 : vector<16x1xf32> to vector<16x64xf32>
    %169 = arith.mulf %164, %168 : vector<16x64xf32>
    %cst_77 = arith.constant dense<0.000000e+00> : vector<64xf32>
    %170 = vector.multi_reduction <add>, %169, %cst_77 [0] : vector<16x64xf32> to vector<64xf32>
    %171 = vector.shape_cast %170 : vector<64xf32> to vector<1x64xf32>
    %c4_i32 = arith.constant 4 : i32
    %172 = arith.addi %107, %c4_i32 : i32
    %173 = arith.index_cast %172 : i32 to index
    %c0_78 = arith.constant 0 : index
    %c0_79 = arith.constant 0 : index
    %174 = vector.load %arg19[%173, %c0_78, %c0_79] : memref<8x16x64xf32, #tpu.memory_space<vmem>>, vector<1x16x64xf32>
    %175 = vector.shape_cast %174 : vector<1x16x64xf32> to vector<16x64xf32>
    %176 = arith.mulf %175, %164 : vector<16x64xf32>
    %177 = arith.index_cast %172 : i32 to index
    %c0_80 = arith.constant 0 : index
    %c0_81 = arith.constant 0 : index
    %178 = vector.load %arg20[%177, %c0_80, %c0_81] : memref<8x16x64xf32, #tpu.memory_space<vmem>>, vector<1x16x64xf32>
    %179 = vector.shape_cast %178 : vector<1x16x64xf32> to vector<16x64xf32>
    %180 = arith.addf %176, %179 : vector<16x64xf32>
    %181 = arith.index_cast %172 : i32 to index
    %c0_82 = arith.constant 0 : index
    %c0_83 = arith.constant 0 : index
    %182 = vector.load %arg21[%181, %c0_82, %c0_83] : memref<8x16x1xf32, #tpu.memory_space<vmem>>, vector<1x16x1xf32>
    %183 = vector.shape_cast %182 : vector<1x16x1xf32> to vector<16x1xf32>
    %184 = vector.broadcast %183 : vector<16x1xf32> to vector<16x64xf32>
    %185 = arith.mulf %180, %184 : vector<16x64xf32>
    %cst_84 = arith.constant dense<0.000000e+00> : vector<64xf32>
    %186 = vector.multi_reduction <add>, %185, %cst_84 [0] : vector<16x64xf32> to vector<64xf32>
    %187 = vector.shape_cast %186 : vector<64xf32> to vector<1x64xf32>
    %c5_i32 = arith.constant 5 : i32
    %188 = arith.addi %107, %c5_i32 : i32
    %189 = arith.index_cast %188 : i32 to index
    %c0_85 = arith.constant 0 : index
    %c0_86 = arith.constant 0 : index
    %190 = vector.load %arg19[%189, %c0_85, %c0_86] : memref<8x16x64xf32, #tpu.memory_space<vmem>>, vector<1x16x64xf32>
    %191 = vector.shape_cast %190 : vector<1x16x64xf32> to vector<16x64xf32>
    %192 = arith.mulf %191, %180 : vector<16x64xf32>
    %193 = arith.index_cast %188 : i32 to index
    %c0_87 = arith.constant 0 : index
    %c0_88 = arith.constant 0 : index
    %194 = vector.load %arg20[%193, %c0_87, %c0_88] : memref<8x16x64xf32, #tpu.memory_space<vmem>>, vector<1x16x64xf32>
    %195 = vector.shape_cast %194 : vector<1x16x64xf32> to vector<16x64xf32>
    %196 = arith.addf %192, %195 : vector<16x64xf32>
    %197 = arith.index_cast %188 : i32 to index
    %c0_89 = arith.constant 0 : index
    %c0_90 = arith.constant 0 : index
    %198 = vector.load %arg21[%197, %c0_89, %c0_90] : memref<8x16x1xf32, #tpu.memory_space<vmem>>, vector<1x16x1xf32>
    %199 = vector.shape_cast %198 : vector<1x16x1xf32> to vector<16x1xf32>
    %200 = vector.broadcast %199 : vector<16x1xf32> to vector<16x64xf32>
    %201 = arith.mulf %196, %200 : vector<16x64xf32>
    %cst_91 = arith.constant dense<0.000000e+00> : vector<64xf32>
    %202 = vector.multi_reduction <add>, %201, %cst_91 [0] : vector<16x64xf32> to vector<64xf32>
    %203 = vector.shape_cast %202 : vector<64xf32> to vector<1x64xf32>
    %c6_i32 = arith.constant 6 : i32
    %204 = arith.addi %107, %c6_i32 : i32
    %205 = arith.index_cast %204 : i32 to index
    %c0_92 = arith.constant 0 : index
    %c0_93 = arith.constant 0 : index
    %206 = vector.load %arg19[%205, %c0_92, %c0_93] : memref<8x16x64xf32, #tpu.memory_space<vmem>>, vector<1x16x64xf32>
    %207 = vector.shape_cast %206 : vector<1x16x64xf32> to vector<16x64xf32>
    %208 = arith.mulf %207, %196 : vector<16x64xf32>
    %209 = arith.index_cast %204 : i32 to index
    %c0_94 = arith.constant 0 : index
    %c0_95 = arith.constant 0 : index
    %210 = vector.load %arg20[%209, %c0_94, %c0_95] : memref<8x16x64xf32, #tpu.memory_space<vmem>>, vector<1x16x64xf32>
    %211 = vector.shape_cast %210 : vector<1x16x64xf32> to vector<16x64xf32>
    %212 = arith.addf %208, %211 : vector<16x64xf32>
    %213 = arith.index_cast %204 : i32 to index
    %c0_96 = arith.constant 0 : index
    %c0_97 = arith.constant 0 : index
    %214 = vector.load %arg21[%213, %c0_96, %c0_97] : memref<8x16x1xf32, #tpu.memory_space<vmem>>, vector<1x16x1xf32>
    %215 = vector.shape_cast %214 : vector<1x16x1xf32> to vector<16x1xf32>
    %216 = vector.broadcast %215 : vector<16x1xf32> to vector<16x64xf32>
    %217 = arith.mulf %212, %216 : vector<16x64xf32>
    %cst_98 = arith.constant dense<0.000000e+00> : vector<64xf32>
    %218 = vector.multi_reduction <add>, %217, %cst_98 [0] : vector<16x64xf32> to vector<64xf32>
    %219 = vector.shape_cast %218 : vector<64xf32> to vector<1x64xf32>
    %c7_i32 = arith.constant 7 : i32
    %220 = arith.addi %107, %c7_i32 : i32
    %221 = arith.index_cast %220 : i32 to index
    %c0_99 = arith.constant 0 : index
    %c0_100 = arith.constant 0 : index
    %222 = vector.load %arg19[%221, %c0_99, %c0_100] : memref<8x16x64xf32, #tpu.memory_space<vmem>>, vector<1x16x64xf32>
    %223 = vector.shape_cast %222 : vector<1x16x64xf32> to vector<16x64xf32>
    %224 = arith.mulf %223, %212 : vector<16x64xf32>
    %225 = arith.index_cast %220 : i32 to index
    %c0_101 = arith.constant 0 : index
    %c0_102 = arith.constant 0 : index
    %226 = vector.load %arg20[%225, %c0_101, %c0_102] : memref<8x16x64xf32, #tpu.memory_space<vmem>>, vector<1x16x64xf32>
    %227 = vector.shape_cast %226 : vector<1x16x64xf32> to vector<16x64xf32>
    %228 = arith.addf %224, %227 : vector<16x64xf32>
    %229 = arith.index_cast %220 : i32 to index
    %c0_103 = arith.constant 0 : index
    %c0_104 = arith.constant 0 : index
    %230 = vector.load %arg21[%229, %c0_103, %c0_104] : memref<8x16x1xf32, #tpu.memory_space<vmem>>, vector<1x16x1xf32>
    %231 = vector.shape_cast %230 : vector<1x16x1xf32> to vector<16x1xf32>
    %232 = vector.broadcast %231 : vector<16x1xf32> to vector<16x64xf32>
    %233 = arith.mulf %228, %232 : vector<16x64xf32>
    %cst_105 = arith.constant dense<0.000000e+00> : vector<64xf32>
    %234 = vector.multi_reduction <add>, %233, %cst_105 [0] : vector<16x64xf32> to vector<64xf32>
    %235 = vector.shape_cast %234 : vector<64xf32> to vector<1x64xf32>
    %236 = tpu.concatenate %123, %139, %155, %171, %187, %203, %219, %235 in 0 : vector<1x64xf32>, vector<1x64xf32>, vector<1x64xf32>, vector<1x64xf32>, vector<1x64xf32>, vector<1x64xf32>, vector<1x64xf32>, vector<1x64xf32> -> vector<8x64xf32>
    %237 = arith.index_cast %107 : i32 to index
    %c0_106 = arith.constant 0 : index
    %238 = vector.load %arg22[%237, %c0_106] : memref<8x64xf32, #tpu.memory_space<vmem>>, vector<8x64xf32>
    tpu.vector_store %arg22[%237, %c0_106], %236 {strides = array<i32>} : memref<8x64xf32, #tpu.memory_space<vmem>>, vector<8x64xf32>,
    %c1_i32_107 = arith.constant 1 : i32
    %c0_108 = arith.constant 0 : index
    %c0_109 = arith.constant 0 : index
    %239 = vector.load %arg23[%c0_108, %c0_109] : memref<16x64xf32, #tpu.memory_space<vmem>>, vector<16x64xf32>
    tpu.vector_store %arg23[%c0_108, %c0_109], %228 {strides = array<i32>} : memref<16x64xf32, #tpu.memory_space<vmem>>, vector<16x64xf32>,
    %c0_110 = arith.constant 0 : index
    %c0_111 = arith.constant 0 : index
    %240 = vector.load %arg22[%c0_110, %c0_111] : memref<8x64xf32, #tpu.memory_space<vmem>>, vector<8x64xf32>
    %c0_112 = arith.constant 0 : index
    %c0_113 = arith.constant 0 : index
    %241 = vector.load %arg14[%c0_112, %c0_113] : memref<1x64xf32, #tpu.memory_space<vmem>>, vector<1x64xf32>
    %242 = vector.broadcast %241 : vector<1x64xf32> to vector<8x64xf32>
    %243 = arith.mulf %242, %52 : vector<8x64xf32>
    %244 = arith.addf %240, %243 : vector<8x64xf32>
    %245 = arith.negf %18 : vector<8x64xf32>
    %246 = math.exp %245 : vector<8x64xf32>
    %cst_114 = arith.constant 1.000000e+00 : f32
    %247 = vector.broadcast %cst_114 : f32 to vector<8x64xf32>
    %248 = arith.addf %247, %246 : vector<8x64xf32>
    %249 = arith.divf %247, %248 : vector<8x64xf32>
    %250 = arith.mulf %18, %249 : vector<8x64xf32>
    %251 = arith.mulf %244, %250 : vector<8x64xf32>
    %252 = arith.truncf %251 : vector<8x64xf32> to vector<8x64xbf16>
    %c0_115 = arith.constant 0 : index
    %c0_116 = arith.constant 0 : index
    %253 = vector.load %arg15[%c0_115, %c0_116] : memref<64x48xbf16, #tpu.memory_space<vmem>>, vector<64x48xbf16>
    %cst_117 = arith.constant dense<0.000000e+00> : vector<8x48xf32>
    %254 = tpu.matmul %252, %253, %cst_117 {dimension_numbers = #tpu.dot_dimension_numbers<[1], [0], [0], [1], [0, 0, 1, 1], [], []>} : vector<8x64xbf16>, vector<64x48xbf16>, vector<8x48xf32> -> vector<8x48xf32>
    %255 = vector.extract_strided_slice %254 {offsets = [0, 0], sizes = [8, 32], strides = [1, 1]} : vector<8x48xf32> to vector<8x32xf32>
    %c0_118 = arith.constant 0 : index
    %c0_119 = arith.constant 0 : index
    %256 = vector.load %arg16[%c0_118, %c0_119] : memref<1x32xf32, #tpu.memory_space<vmem>>, vector<1x32xf32>
    %257 = vector.broadcast %256 : vector<1x32xf32> to vector<8x32xf32>
    %258 = arith.addf %255, %257 : vector<8x32xf32>
    %259 = vector.extract_strided_slice %254 {offsets = [0, 32], sizes = [8, 16], strides = [1, 1]} : vector<8x48xf32> to vector<8x16xf32>
    %260 = arith.truncf %259 : vector<8x16xf32> to vector<8x16xbf16>
    %c0_120 = arith.constant 0 : index
    %c0_121 = arith.constant 0 : index
    %261 = vector.load %arg17[%c0_120, %c0_121] : memref<16x32xbf16, #tpu.memory_space<vmem>>, vector<16x32xbf16>
    %cst_122 = arith.constant dense<0.000000e+00> : vector<8x32xf32>
    %262 = tpu.matmul %260, %261, %cst_122 {dimension_numbers = #tpu.dot_dimension_numbers<[1], [0], [0], [1], [0, 0, 1, 1], [], []>} : vector<8x16xbf16>, vector<16x32xbf16>, vector<8x32xf32> -> vector<8x32xf32>
    %263 = arith.addf %258, %262 : vector<8x32xf32>
    %264 = arith.addf %4, %263 : vector<8x32xf32>
    %c0_123 = arith.constant 0 : index
    %c0_124 = arith.constant 0 : index
    %c0_125 = arith.constant 0 : index
    %265 = vector.load %arg18[%c0_123, %c0_124, %c0_125] : memref<1x8x32xf32, #tpu.memory_space<vmem>>, vector<1x8x32xf32>
    %266 = vector.shape_cast %265 : vector<1x8x32xf32> to vector<8x32xf32>
    %267 = vector.shape_cast %264 : vector<8x32xf32> to vector<1x8x32xf32>
    tpu.vector_store %arg18[%c0_123, %c0_124, %c0_125], %267 {strides = array<i32>} : memref<1x8x32xf32, #tpu.memory_space<vmem>>, vector<1x8x32xf32>,
    return
  }
  func.func @transform_0(%arg0: i32, %arg1: i32) -> (i32, i32, i32) {
    %c0_i32 = arith.constant 0 : i32
    %c0_i32_0 = arith.constant 0 : i32
    return %arg0, %arg1, %c0_i32 : i32, i32, i32
  }
  func.func @transform_1(%arg0: i32, %arg1: i32) -> (i32, i32) {
    %c0_i32 = arith.constant 0 : i32
    %c0_i32_0 = arith.constant 0 : i32
    %c0_i32_1 = arith.constant 0 : i32
    return %c0_i32, %c0_i32_0 : i32, i32
  }
  func.func @transform_2(%arg0: i32, %arg1: i32) -> (i32, i32) {
    %c0_i32 = arith.constant 0 : i32
    %c0_i32_0 = arith.constant 0 : i32
    %c0_i32_1 = arith.constant 0 : i32
    return %c0_i32, %c0_i32_0 : i32, i32
  }
  func.func @transform_3(%arg0: i32, %arg1: i32) -> (i32, i32) {
    %c0_i32 = arith.constant 0 : i32
    %c0_i32_0 = arith.constant 0 : i32
    %c0_i32_1 = arith.constant 0 : i32
    return %c0_i32, %c0_i32_0 : i32, i32
  }
  func.func @transform_4(%arg0: i32, %arg1: i32) -> (i32, i32) {
    %c0_i32 = arith.constant 0 : i32
    %c0_i32_0 = arith.constant 0 : i32
    %c0_i32_1 = arith.constant 0 : i32
    return %c0_i32, %c0_i32_0 : i32, i32
  }
  func.func @transform_5(%arg0: i32, %arg1: i32) -> (i32, i32) {
    %c0_i32 = arith.constant 0 : i32
    %c0_i32_0 = arith.constant 0 : i32
    %c0_i32_1 = arith.constant 0 : i32
    return %c0_i32, %c0_i32_0 : i32, i32
  }
  func.func @transform_6(%arg0: i32, %arg1: i32) -> (i32, i32) {
    %c0_i32 = arith.constant 0 : i32
    %c0_i32_0 = arith.constant 0 : i32
    %c0_i32_1 = arith.constant 0 : i32
    return %c0_i32, %c0_i32_0 : i32, i32
  }
  func.func @transform_7(%arg0: i32, %arg1: i32) -> (i32, i32) {
    %c0_i32 = arith.constant 0 : i32
    %c0_i32_0 = arith.constant 0 : i32
    %c0_i32_1 = arith.constant 0 : i32
    return %c0_i32, %c0_i32_0 : i32, i32
  }
  func.func @transform_8(%arg0: i32, %arg1: i32) -> (i32, i32) {
    %c0_i32 = arith.constant 0 : i32
    %c0_i32_0 = arith.constant 0 : i32
    %c0_i32_1 = arith.constant 0 : i32
    return %c0_i32, %c0_i32_0 : i32, i32
  }
  func.func @transform_9(%arg0: i32, %arg1: i32) -> (i32, i32) {
    %c0_i32 = arith.constant 0 : i32
    %c0_i32_0 = arith.constant 0 : i32
    %c0_i32_1 = arith.constant 0 : i32
    return %c0_i32, %c0_i32_0 : i32, i32
  }
  func.func @transform_10(%arg0: i32, %arg1: i32) -> (i32, i32) {
    %c0_i32 = arith.constant 0 : i32
    %c0_i32_0 = arith.constant 0 : i32
    %c0_i32_1 = arith.constant 0 : i32
    return %c0_i32, %c0_i32_0 : i32, i32
  }
  func.func @transform_11(%arg0: i32, %arg1: i32) -> (i32, i32) {
    %c0_i32 = arith.constant 0 : i32
    %c0_i32_0 = arith.constant 0 : i32
    %c0_i32_1 = arith.constant 0 : i32
    return %c0_i32, %c0_i32_0 : i32, i32
  }
  func.func @transform_12(%arg0: i32, %arg1: i32) -> (i32, i32) {
    %c0_i32 = arith.constant 0 : i32
    %c0_i32_0 = arith.constant 0 : i32
    %c0_i32_1 = arith.constant 0 : i32
    return %c0_i32, %c0_i32_0 : i32, i32
  }
  func.func @transform_13(%arg0: i32, %arg1: i32) -> (i32, i32) {
    %c0_i32 = arith.constant 0 : i32
    %c0_i32_0 = arith.constant 0 : i32
    %c0_i32_1 = arith.constant 0 : i32
    return %c0_i32, %c0_i32_0 : i32, i32
  }
  func.func @transform_14(%arg0: i32, %arg1: i32) -> (i32, i32) {
    %c0_i32 = arith.constant 0 : i32
    %c0_i32_0 = arith.constant 0 : i32
    %c0_i32_1 = arith.constant 0 : i32
    return %c0_i32, %c0_i32_0 : i32, i32
  }
  func.func @transform_15(%arg0: i32, %arg1: i32) -> (i32, i32) {
    %c0_i32 = arith.constant 0 : i32
    %c0_i32_0 = arith.constant 0 : i32
    %c0_i32_1 = arith.constant 0 : i32
    return %c0_i32, %c0_i32_0 : i32, i32
  }
  func.func @transform_16(%arg0: i32, %arg1: i32) -> (i32, i32, i32) {
    %c0_i32 = arith.constant 0 : i32
    %c0_i32_0 = arith.constant 0 : i32
    return %arg0, %arg1, %c0_i32 : i32, i32, i32
  }
}

</mosaic_0001>

<llo_original>
// kernel: tpu_custom_call.1
$region0: #{tpu_custom_call.1}
  #allocation0 [shape = 'u32[]', space=smem, size = 0x4, offset = 0x4, fixed_abs, tag = 'smem constant byte address 0x4 - core index']
  #allocation1 [shape = 'u32[144,128]{1,0:T(1,128)}', space=vmem, size = 0x12000, scoped, tag = 'internal scratch']
  #allocation2 [shape = 'f32[8,16,64]{2,1,0:T(8,128)}', space=vmem, size = 0x10000, scoped, tag = 'scratch operand']
  #allocation3 [shape = 'f32[8,16,64]{2,1,0:T(8,128)}', space=vmem, size = 0x10000, scoped, tag = 'scratch operand']
  #allocation4 [shape = 'f32[8,16,1]{2,1,0:T(8,128)}', space=vmem, size = 0x10000, scoped, tag = 'scratch operand']
  #allocation5 [shape = 'f32[8,64]{1,0:T(8,128)}', space=vmem, size = 0x1000, scoped, tag = 'scratch operand']
  #allocation6 [shape = 'f32[16,64]{1,0:T(8,128)}', space=vmem, size = 0x2000, scoped, tag = 'scratch operand']
  #allocation7 [shape = 'f32[3,64]{1,0:T(4,128)}', space=vmem, size = 0x800, scoped, tag = 'scratch operand']
  %s0 = inlined_call_operand.hbm [shape: f32[2,8,32], index: 0, kind: input, shape index: {}, may-alias: {0,16}]
  %s1 = inlined_call_operand.vmem [shape: bf16[32,144], index: 1, kind: input, shape index: {}]
  %s2 = inlined_call_operand.vmem [shape: f32[1,128], index: 2, kind: input, shape index: {}]
  %s3 = inlined_call_operand.vmem [shape: bf16[16,128], index: 3, kind: input, shape index: {}]
  %s4 = inlined_call_operand.vmem [shape: f32[4,64], index: 4, kind: input, shape index: {}]
  %s5 = inlined_call_operand.vmem [shape: f32[1,64], index: 5, kind: input, shape index: {}]
  %s6 = inlined_call_operand.vmem [shape: bf16[64,128], index: 6, kind: input, shape index: {}]
  %s7 = inlined_call_operand.vmem [shape: bf16[128,64], index: 7, kind: input, shape index: {}]
  %s8 = inlined_call_operand.vmem [shape: f32[1,64], index: 8, kind: input, shape index: {}]
  %s9 = inlined_call_operand.vmem [shape: f32[16,64], index: 9, kind: input, shape index: {}]
  %s10 = inlined_call_operand.vmem [shape: f32[16,64], index: 10, kind: input, shape index: {}]
  %s11 = inlined_call_operand.vmem [shape: f32[16,64], index: 11, kind: input, shape index: {}]
  %s12 = inlined_call_operand.vmem [shape: f32[1,64], index: 12, kind: input, shape index: {}]
  %s13 = inlined_call_operand.vmem [shape: bf16[64,48], index: 13, kind: input, shape index: {}]
  %s14 = inlined_call_operand.vmem [shape: f32[1,32], index: 14, kind: input, shape index: {}]
  %s15 = inlined_call_operand.vmem [shape: bf16[16,32], index: 15, kind: input, shape index: {}]
  %s16 = inlined_call_operand.hbm [shape: f32[2,8,32], index: 16, kind: output, shape index: {}, may-alias: {0,16}]
  %s17 = sld [smem:[#allocation0]]
  $region105: #{tpu_custom_call.1} parent=0
    _
  %s19 = ssub.s32 1, %s17
  %s20 = scalar_select 0, %s19, %s17
  $region1: #{tpu_custom_call.1} parent=0
    #allocation8 [shape = 'u8[8192]{0}', space=vmem, size = 0x2000, scoped, tag = 'input window, operand 0']
    #allocation9 [shape = 's32[2]{0}', space=sflag, size = 0x8, scoped, tag = 'scoped memory for tpu_custom_call.1']
    #allocation10 [shape = 's32[2]{0}', space=sflag, size = 0x8, scoped, tag = 'scoped memory for tpu_custom_call.1']
    #allocation11 [shape = 'u8[8192]{0}', space=vmem, size = 0x2000, scoped, tag = 'output window, operand 0']
    %21 = vsyncpa [#allocation9], 0
    %s22 = scalar_lea.sflag [#allocation9], 1
    %23 = vsyncpa %s22, 0
    %24 = vsyncpa [#allocation10], 0
    %s25 = scalar_lea.sflag [#allocation10], 1
    %26 = vsyncpa %s25, 0
    loop: start=0, step=1, limit=4
    $region2: #{tpu_custom_call.1} parent=1 // loop_pre_header
      _
    $region3: #{tpu_custom_call.1} parent=1 // loop_header
      %s28 = sphi 0, %s32
      %p29 = scmp.ge.s32.totalorder %s28, 4
      %s35 = sphi 0, %s47
      %s36 = sphi 0, %s43
      %s37 = sphi 0, %s35
      %s38 = sphi 0, %s36
      %s39 = sphi 0, %s37
      %s40 = sphi 0, %s38
      %s52 = sphi 0, %s54
      %s55 = sphi 0, %s52
      %s56 = sphi 0, %s55
      %s72 = sphi 0, %s56
      %s76 = sphi 0, %s76
      %s78 = sphi 0, %s76
      %s79 = sphi 0, %s78
      %s93 = sphi 0, %s79
      %s97 = sphi 0, %s97
      %s99 = sphi 0, %s97
      %s100 = sphi 0, %s99
      %s114 = sphi 0, %s100
      %s118 = sphi 0, %s118
      %s120 = sphi 0, %s118
      %s121 = sphi 0, %s120
      %s135 = sphi 0, %s121
      %s139 = sphi 0, %s139
      %s141 = sphi 0, %s139
      %s142 = sphi 0, %s141
      %s156 = sphi 0, %s142
      %s160 = sphi 0, %s160
      %s162 = sphi 0, %s160
      %s163 = sphi 0, %s162
      %s177 = sphi 0, %s163
      %s181 = sphi 0, %s181
      %s183 = sphi 0, %s181
      %s184 = sphi 0, %s183
      %s198 = sphi 0, %s184
      %s202 = sphi 0, %s202
      %s204 = sphi 0, %s202
      %s205 = sphi 0, %s204
      %s219 = sphi 0, %s205
      %s223 = sphi 0, %s223
      %s225 = sphi 0, %s223
      %s226 = sphi 0, %s225
      %s240 = sphi 0, %s226
      %s244 = sphi 0, %s244
      %s246 = sphi 0, %s244
      %s247 = sphi 0, %s246
      %s261 = sphi 0, %s247
      %s265 = sphi 0, %s265
      %s267 = sphi 0, %s265
      %s268 = sphi 0, %s267
      %s282 = sphi 0, %s268
      %s286 = sphi 0, %s286
      %s288 = sphi 0, %s286
      %s289 = sphi 0, %s288
      %s303 = sphi 0, %s289
      %s307 = sphi 0, %s307
      %s309 = sphi 0, %s307
      %s310 = sphi 0, %s309
      %s324 = sphi 0, %s310
      %s328 = sphi 0, %s328
      %s330 = sphi 0, %s328
      %s331 = sphi 0, %s330
      %s345 = sphi 0, %s331
      %s349 = sphi 0, %s349
      %s351 = sphi 0, %s349
      %s352 = sphi 0, %s351
      %s366 = sphi 0, %s352
      %s370 = sphi 0, %s370
      %s372 = sphi 0, %s370
      %s373 = sphi 0, %s372
      %s387 = sphi 0, %s373
      %s395 = sphi 0, %s397
      %s398 = sphi 0, %s395
      %s399 = sphi 0, %s398
      %s415 = sphi 0, %s399
    $region4: #{tpu_custom_call.1} parent=1 // loop_header_branch
      %31 = sbr.rel (%p29) target = $region8
    $region5: #{tpu_custom_call.1} parent=1 // loop_body
      %s33 = ssub.s32 %s28, 1
      %s34 = ssub.s32 %s28, 2
      %s41 = sadd.s32 1, %s36
      %p42 = scmp.ge.s32.totalorder %s41, 1
      %s43 = scalar_select %p42, 0, %s41
      %s44 = sadd.s32 1, %s35
      %s45 = scalar_select %p42, %s44, %s35
      %p46 = scmp.ge.s32.totalorder %s45, 2
      %s47 = scalar_select %p46, 0, %s45
      %s48 = ssub.s32 %s35, %s47
      %s49 = ssub.s32 %s36, %s43
      %s50 = sor.u32 %s48, %s49
      %p51 = scmp.eq.s32.totalorder %s50, 0
      %s53 = sadd.s32 %s52, 1
      %s54 = scalar_select %p51, %s52, %s53
      %p57 = pneg %p51
      %p58 = scmp.eq.s32.totalorder %s28, 1
      %p59 = por %p57, %p58
      %p60 = scmp.ne.s32.totalorder %s52, %s55
      %p61 = scmp.eq.s32.totalorder %s28, 0
      %p62 = por %p60, %p61
      %p63 = scmp.ne.s32.totalorder %s52, %s55
      %p64 = scmp.eq.s32.totalorder %s33, 1
      %p65 = por %p63, %p64
      %p66 = scmp.ne.s32.totalorder %s55, %s56
      %p67 = scmp.eq.s32.totalorder %s33, 0
      %p68 = por %p66, %p67
      %p69 = scmp.ne.s32.totalorder %s55, %s56
      %p70 = scmp.eq.s32.totalorder %s34, 1
      %p71 = por %p69, %p70
      %p73 = scmp.ne.s32.totalorder %s56, %s72
      %p74 = scmp.eq.s32.totalorder %s34, 0
      %p75 = por %p73, %p74
      %s77 = sadd.s32 %s76, 1
      %p80 = scmp.eq.s32.totalorder %s28, 1
      %p81 = scmp.ne.s32.totalorder %s76, %s78
      %p82 = scmp.eq.s32.totalorder %s28, 0
      %p83 = por %p81, %p82
      %p84 = scmp.ne.s32.totalorder %s76, %s78
      %p85 = scmp.eq.s32.totalorder %s33, 1
      %p86 = por %p84, %p85
      %p87 = scmp.ne.s32.totalorder %s78, %s79
      %p88 = scmp.eq.s32.totalorder %s33, 0
      %p89 = por %p87, %p88
      %p90 = scmp.ne.s32.totalorder %s78, %s79
      %p91 = scmp.eq.s32.totalorder %s34, 1
      %p92 = por %p90, %p91
      %p94 = scmp.ne.s32.totalorder %s79, %s93
      %p95 = scmp.eq.s32.totalorder %s34, 0
      %p96 = por %p94, %p95
      %s98 = sadd.s32 %s97, 1
      %p101 = scmp.eq.s32.totalorder %s28, 1
      %p102 = scmp.ne.s32.totalorder %s97, %s99
      %p103 = scmp.eq.s32.totalorder %s28, 0
      %p104 = por %p102, %p103
      %p105 = scmp.ne.s32.totalorder %s97, %s99
      %p106 = scmp.eq.s32.totalorder %s33, 1
      %p107 = por %p105, %p106
      %p108 = scmp.ne.s32.totalorder %s99, %s100
      %p109 = scmp.eq.s32.totalorder %s33, 0
      %p110 = por %p108, %p109
      %p111 = scmp.ne.s32.totalorder %s99, %s100
      %p112 = scmp.eq.s32.totalorder %s34, 1
      %p113 = por %p111, %p112
      %p115 = scmp.ne.s32.totalorder %s100, %s114
      %p116 = scmp.eq.s32.totalorder %s34, 0
      %p117 = por %p115, %p116
      %s119 = sadd.s32 %s118, 1
      %p122 = scmp.eq.s32.totalorder %s28, 1
      %p123 = scmp.ne.s32.totalorder %s118, %s120
      %p124 = scmp.eq.s32.totalorder %s28, 0
      %p125 = por %p123, %p124
      %p126 = scmp.ne.s32.totalorder %s118, %s120
      %p127 = scmp.eq.s32.totalorder %s33, 1
      %p128 = por %p126, %p127
      %p129 = scmp.ne.s32.totalorder %s120, %s121
      %p130 = scmp.eq.s32.totalorder %s33, 0
      %p131 = por %p129, %p130
      %p132 = scmp.ne.s32.totalorder %s120, %s121
      %p133 = scmp.eq.s32.totalorder %s34, 1
      %p134 = por %p132, %p133
      %p136 = scmp.ne.s32.totalorder %s121, %s135
      %p137 = scmp.eq.s32.totalorder %s34, 0
      %p138 = por %p136, %p137
      %s140 = sadd.s32 %s139, 1
      %p143 = scmp.eq.s32.totalorder %s28, 1
      %p144 = scmp.ne.s32.totalorder %s139, %s141
      %p145 = scmp.eq.s32.totalorder %s28, 0
      %p146 = por %p144, %p145
      %p147 = scmp.ne.s32.totalorder %s139, %s141
      %p148 = scmp.eq.s32.totalorder %s33, 1
      %p149 = por %p147, %p148
      %p150 = scmp.ne.s32.totalorder %s141, %s142
      %p151 = scmp.eq.s32.totalorder %s33, 0
      %p152 = por %p150, %p151
      %p153 = scmp.ne.s32.totalorder %s141, %s142
      %p154 = scmp.eq.s32.totalorder %s34, 1
      %p155 = por %p153, %p154
      %p157 = scmp.ne.s32.totalorder %s142, %s156
      %p158 = scmp.eq.s32.totalorder %s34, 0
      %p159 = por %p157, %p158
      %s161 = sadd.s32 %s160, 1
      %p164 = scmp.eq.s32.totalorder %s28, 1
      %p165 = scmp.ne.s32.totalorder %s160, %s162
      %p166 = scmp.eq.s32.totalorder %s28, 0
      %p167 = por %p165, %p166
      %p168 = scmp.ne.s32.totalorder %s160, %s162
      %p169 = scmp.eq.s32.totalorder %s33, 1
      %p170 = por %p168, %p169
      %p171 = scmp.ne.s32.totalorder %s162, %s163
      %p172 = scmp.eq.s32.totalorder %s33, 0
      %p173 = por %p171, %p172
      %p174 = scmp.ne.s32.totalorder %s162, %s163
      %p175 = scmp.eq.s32.totalorder %s34, 1
      %p176 = por %p174, %p175
      %p178 = scmp.ne.s32.totalorder %s163, %s177
      %p179 = scmp.eq.s32.totalorder %s34, 0
      %p180 = por %p178, %p179
      %s182 = sadd.s32 %s181, 1
      %p185 = scmp.eq.s32.totalorder %s28, 1
      %p186 = scmp.ne.s32.totalorder %s181, %s183
      %p187 = scmp.eq.s32.totalorder %s28, 0
      %p188 = por %p186, %p187
      %p189 = scmp.ne.s32.totalorder %s181, %s183
      %p190 = scmp.eq.s32.totalorder %s33, 1
      %p191 = por %p189, %p190
      %p192 = scmp.ne.s32.totalorder %s183, %s184
      %p193 = scmp.eq.s32.totalorder %s33, 0
      %p194 = por %p192, %p193
      %p195 = scmp.ne.s32.totalorder %s183, %s184
      %p196 = scmp.eq.s32.totalorder %s34, 1
      %p197 = por %p195, %p196
      %p199 = scmp.ne.s32.totalorder %s184, %s198
      %p200 = scmp.eq.s32.totalorder %s34, 0
      %p201 = por %p199, %p200
      %s203 = sadd.s32 %s202, 1
      %p206 = scmp.eq.s32.totalorder %s28, 1
      %p207 = scmp.ne.s32.totalorder %s202, %s204
      %p208 = scmp.eq.s32.totalorder %s28, 0
      %p209 = por %p207, %p208
      %p210 = scmp.ne.s32.totalorder %s202, %s204
      %p211 = scmp.eq.s32.totalorder %s33, 1
      %p212 = por %p210, %p211
      %p213 = scmp.ne.s32.totalorder %s204, %s205
      %p214 = scmp.eq.s32.totalorder %s33, 0
      %p215 = por %p213, %p214
      %p216 = scmp.ne.s32.totalorder %s204, %s205
      %p217 = scmp.eq.s32.totalorder %s34, 1
      %p218 = por %p216, %p217
      %p220 = scmp.ne.s32.totalorder %s205, %s219
      %p221 = scmp.eq.s32.totalorder %s34, 0
      %p222 = por %p220, %p221
      %s224 = sadd.s32 %s223, 1
      %p227 = scmp.eq.s32.totalorder %s28, 1
      %p228 = scmp.ne.s32.totalorder %s223, %s225
      %p229 = scmp.eq.s32.totalorder %s28, 0
      %p230 = por %p228, %p229
      %p231 = scmp.ne.s32.totalorder %s223, %s225
      %p232 = scmp.eq.s32.totalorder %s33, 1
      %p233 = por %p231, %p232
      %p234 = scmp.ne.s32.totalorder %s225, %s226
      %p235 = scmp.eq.s32.totalorder %s33, 0
      %p236 = por %p234, %p235
      %p237 = scmp.ne.s32.totalorder %s225, %s226
      %p238 = scmp.eq.s32.totalorder %s34, 1
      %p239 = por %p237, %p238
      %p241 = scmp.ne.s32.totalorder %s226, %s240
      %p242 = scmp.eq.s32.totalorder %s34, 0
      %p243 = por %p241, %p242
      %s245 = sadd.s32 %s244, 1
      %p248 = scmp.eq.s32.totalorder %s28, 1
      %p249 = scmp.ne.s32.totalorder %s244, %s246
      %p250 = scmp.eq.s32.totalorder %s28, 0
      %p251 = por %p249, %p250
      %p252 = scmp.ne.s32.totalorder %s244, %s246
      %p253 = scmp.eq.s32.totalorder %s33, 1
      %p254 = por %p252, %p253
      %p255 = scmp.ne.s32.totalorder %s246, %s247
      %p256 = scmp.eq.s32.totalorder %s33, 0
      %p257 = por %p255, %p256
      %p258 = scmp.ne.s32.totalorder %s246, %s247
      %p259 = scmp.eq.s32.totalorder %s34, 1
      %p260 = por %p258, %p259
      %p262 = scmp.ne.s32.totalorder %s247, %s261
      %p263 = scmp.eq.s32.totalorder %s34, 0
      %p264 = por %p262, %p263
      %s266 = sadd.s32 %s265, 1
      %p269 = scmp.eq.s32.totalorder %s28, 1
      %p270 = scmp.ne.s32.totalorder %s265, %s267
      %p271 = scmp.eq.s32.totalorder %s28, 0
      %p272 = por %p270, %p271
      %p273 = scmp.ne.s32.totalorder %s265, %s267
      %p274 = scmp.eq.s32.totalorder %s33, 1
      %p275 = por %p273, %p274
      %p276 = scmp.ne.s32.totalorder %s267, %s268
      %p277 = scmp.eq.s32.totalorder %s33, 0
      %p278 = por %p276, %p277
      %p279 = scmp.ne.s32.totalorder %s267, %s268
      %p280 = scmp.eq.s32.totalorder %s34, 1
      %p281 = por %p279, %p280
      %p283 = scmp.ne.s32.totalorder %s268, %s282
      %p284 = scmp.eq.s32.totalorder %s34, 0
      %p285 = por %p283, %p284
      %s287 = sadd.s32 %s286, 1
      %p290 = scmp.eq.s32.totalorder %s28, 1
      %p291 = scmp.ne.s32.totalorder %s286, %s288
      %p292 = scmp.eq.s32.totalorder %s28, 0
      %p293 = por %p291, %p292
      %p294 = scmp.ne.s32.totalorder %s286, %s288
      %p295 = scmp.eq.s32.totalorder %s33, 1
      %p296 = por %p294, %p295
      %p297 = scmp.ne.s32.totalorder %s288, %s289
      %p298 = scmp.eq.s32.totalorder %s33, 0
      %p299 = por %p297, %p298
      %p300 = scmp.ne.s32.totalorder %s288, %s289
      %p301 = scmp.eq.s32.totalorder %s34, 1
      %p302 = por %p300, %p301
      %p304 = scmp.ne.s32.totalorder %s289, %s303
      %p305 = scmp.eq.s32.totalorder %s34, 0
      %p306 = por %p304, %p305
      %s308 = sadd.s32 %s307, 1
      %p311 = scmp.eq.s32.totalorder %s28, 1
      %p312 = scmp.ne.s32.totalorder %s307, %s309
      %p313 = scmp.eq.s32.totalorder %s28, 0
      %p314 = por %p312, %p313
      %p315 = scmp.ne.s32.totalorder %s307, %s309
      %p316 = scmp.eq.s32.totalorder %s33, 1
      %p317 = por %p315, %p316
      %p318 = scmp.ne.s32.totalorder %s309, %s310
      %p319 = scmp.eq.s32.totalorder %s33, 0
      %p320 = por %p318, %p319
      %p321 = scmp.ne.s32.totalorder %s309, %s310
      %p322 = scmp.eq.s32.totalorder %s34, 1
      %p323 = por %p321, %p322
      %p325 = scmp.ne.s32.totalorder %s310, %s324
      %p326 = scmp.eq.s32.totalorder %s34, 0
      %p327 = por %p325, %p326
      %s329 = sadd.s32 %s328, 1
      %p332 = scmp.eq.s32.totalorder %s28, 1
      %p333 = scmp.ne.s32.totalorder %s328, %s330
      %p334 = scmp.eq.s32.totalorder %s28, 0
      %p335 = por %p333, %p334
      %p336 = scmp.ne.s32.totalorder %s328, %s330
      %p337 = scmp.eq.s32.totalorder %s33, 1
      %p338 = por %p336, %p337
      %p339 = scmp.ne.s32.totalorder %s330, %s331
      %p340 = scmp.eq.s32.totalorder %s33, 0
      %p341 = por %p339, %p340
      %p342 = scmp.ne.s32.totalorder %s330, %s331
      %p343 = scmp.eq.s32.totalorder %s34, 1
      %p344 = por %p342, %p343
      %p346 = scmp.ne.s32.totalorder %s331, %s345
      %p347 = scmp.eq.s32.totalorder %s34, 0
      %p348 = por %p346, %p347
      %s350 = sadd.s32 %s349, 1
      %p353 = scmp.eq.s32.totalorder %s28, 1
      %p354 = scmp.ne.s32.totalorder %s349, %s351
      %p355 = scmp.eq.s32.totalorder %s28, 0
      %p356 = por %p354, %p355
      %p357 = scmp.ne.s32.totalorder %s349, %s351
      %p358 = scmp.eq.s32.totalorder %s33, 1
      %p359 = por %p357, %p358
      %p360 = scmp.ne.s32.totalorder %s351, %s352
      %p361 = scmp.eq.s32.totalorder %s33, 0
      %p362 = por %p360, %p361
      %p363 = scmp.ne.s32.totalorder %s351, %s352
      %p364 = scmp.eq.s32.totalorder %s34, 1
      %p365 = por %p363, %p364
      %p367 = scmp.ne.s32.totalorder %s352, %s366
      %p368 = scmp.eq.s32.totalorder %s34, 0
      %p369 = por %p367, %p368
      %s371 = sadd.s32 %s370, 1
      %p374 = scmp.eq.s32.totalorder %s28, 1
      %p375 = scmp.ne.s32.totalorder %s370, %s372
      %p376 = scmp.eq.s32.totalorder %s28, 0
      %p377 = por %p375, %p376
      %p378 = scmp.ne.s32.totalorder %s370, %s372
      %p379 = scmp.eq.s32.totalorder %s33, 1
      %p380 = por %p378, %p379
      %p381 = scmp.ne.s32.totalorder %s372, %s373
      %p382 = scmp.eq.s32.totalorder %s33, 0
      %p383 = por %p381, %p382
      %p384 = scmp.ne.s32.totalorder %s372, %s373
      %p385 = scmp.eq.s32.totalorder %s34, 1
      %p386 = por %p384, %p385
      %p388 = scmp.ne.s32.totalorder %s373, %s387
      %p389 = scmp.eq.s32.totalorder %s34, 0
      %p390 = por %p388, %p389
      %s391 = ssub.s32 %s35, %s47
      %s392 = ssub.s32 %s36, %s43
      %s393 = sor.u32 %s391, %s392
      %p394 = scmp.eq.s32.totalorder %s393, 0
      %s396 = sadd.s32 %s395, 1
      %s397 = scalar_select %p394, %s395, %s396
      %p400 = pneg %p394
      %p401 = scmp.eq.s32.totalorder %s28, 1
      %p402 = por %p400, %p401
      %p403 = scmp.ne.s32.totalorder %s395, %s398
      %p404 = scmp.eq.s32.totalorder %s28, 0
      %p405 = por %p403, %p404
      %p406 = scmp.ne.s32.totalorder %s395, %s398
      %p407 = scmp.eq.s32.totalorder %s33, 1
      %p408 = por %p406, %p407
      %p409 = scmp.ne.s32.totalorder %s398, %s399
      %p410 = scmp.eq.s32.totalorder %s33, 0
      %p411 = por %p409, %p410
      %p412 = scmp.ne.s32.totalorder %s398, %s399
      %p413 = scmp.eq.s32.totalorder %s34, 1
      %p414 = por %p412, %p413
      %p416 = scmp.ne.s32.totalorder %s399, %s415
      %p417 = scmp.eq.s32.totalorder %s34, 0
      %p418 = por %p416, %p417
      %p419 = scmp.le.s32.totalorder 1, %s28
      %p420 = scmp.lt.s32.totalorder %s28, 3
      %p421 = pnand %p419, %p420
      %p422 = pneg %p421
      // Predicated region
      $region9: #{tpu_custom_call.1} parent=5 // pred_check
        _
      $region10: #{tpu_custom_call.1} parent=5 // pred_check_branch
        %424 = sbr.rel (%p421) target = $region12
      $region11: #{tpu_custom_call.1} parent=5 // pred_region
        %s425 = ssub.s32 %s28, 1
        // Predicated region
        $region13: #{tpu_custom_call.1} parent=11 // pred_check
          %p426 = pneg %p89
        $region14: #{tpu_custom_call.1} parent=11 // pred_check_branch
          %428 = sbr.rel (%p426) target = $region16
        $region15: #{tpu_custom_call.1} parent=11 // pred_region
          _
        $region16: #{tpu_custom_call.1} parent=11 // pred_fallthru
          _
        // Predicated region
        $region17: #{tpu_custom_call.1} parent=11 // pred_check
          %p429 = pneg %p110
        $region18: #{tpu_custom_call.1} parent=11 // pred_check_branch
          %431 = sbr.rel (%p429) target = $region20
        $region19: #{tpu_custom_call.1} parent=11 // pred_region
          _
        $region20: #{tpu_custom_call.1} parent=11 // pred_fallthru
          _
        // Predicated region
        $region21: #{tpu_custom_call.1} parent=11 // pred_check
          %p432 = pneg %p131
        $region22: #{tpu_custom_call.1} parent=11 // pred_check_branch
          %434 = sbr.rel (%p432) target = $region24
        $region23: #{tpu_custom_call.1} parent=11 // pred_region
          _
        $region24: #{tpu_custom_call.1} parent=11 // pred_fallthru
          _
        // Predicated region
        $region25: #{tpu_custom_call.1} parent=11 // pred_check
          %p435 = pneg %p152
        $region26: #{tpu_custom_call.1} parent=11 // pred_check_branch
          %437 = sbr.rel (%p435) target = $region28
        $region27: #{tpu_custom_call.1} parent=11 // pred_region
          _
        $region28: #{tpu_custom_call.1} parent=11 // pred_fallthru
          _
        // Predicated region
        $region29: #{tpu_custom_call.1} parent=11 // pred_check
          %p438 = pneg %p173
        $region30: #{tpu_custom_call.1} parent=11 // pred_check_branch
          %440 = sbr.rel (%p438) target = $region32
        $region31: #{tpu_custom_call.1} parent=11 // pred_region
          _
        $region32: #{tpu_custom_call.1} parent=11 // pred_fallthru
          _
        // Predicated region
        $region33: #{tpu_custom_call.1} parent=11 // pred_check
          %p441 = pneg %p194
        $region34: #{tpu_custom_call.1} parent=11 // pred_check_branch
          %443 = sbr.rel (%p441) target = $region36
        $region35: #{tpu_custom_call.1} parent=11 // pred_region
          _
        $region36: #{tpu_custom_call.1} parent=11 // pred_fallthru
          _
        // Predicated region
        $region37: #{tpu_custom_call.1} parent=11 // pred_check
          %p444 = pneg %p215
        $region38: #{tpu_custom_call.1} parent=11 // pred_check_branch
          %446 = sbr.rel (%p444) target = $region40
        $region39: #{tpu_custom_call.1} parent=11 // pred_region
          _
        $region40: #{tpu_custom_call.1} parent=11 // pred_fallthru
          _
        // Predicated region
        $region41: #{tpu_custom_call.1} parent=11 // pred_check
          %p447 = pneg %p236
        $region42: #{tpu_custom_call.1} parent=11 // pred_check_branch
          %449 = sbr.rel (%p447) target = $region44
        $region43: #{tpu_custom_call.1} parent=11 // pred_region
          _
        $region44: #{tpu_custom_call.1} parent=11 // pred_fallthru
          _
        // Predicated region
        $region45: #{tpu_custom_call.1} parent=11 // pred_check
          %p450 = pneg %p257
        $region46: #{tpu_custom_call.1} parent=11 // pred_check_branch
          %452 = sbr.rel (%p450) target = $region48
        $region47: #{tpu_custom_call.1} parent=11 // pred_region
          _
        $region48: #{tpu_custom_call.1} parent=11 // pred_fallthru
          _
        // Predicated region
        $region49: #{tpu_custom_call.1} parent=11 // pred_check
          %p453 = pneg %p278
        $region50: #{tpu_custom_call.1} parent=11 // pred_check_branch
          %455 = sbr.rel (%p453) target = $region52
        $region51: #{tpu_custom_call.1} parent=11 // pred_region
          _
        $region52: #{tpu_custom_call.1} parent=11 // pred_fallthru
          _
        // Predicated region
        $region53: #{tpu_custom_call.1} parent=11 // pred_check
          %p456 = pneg %p299
        $region54: #{tpu_custom_call.1} parent=11 // pred_check_branch
          %458 = sbr.rel (%p456) target = $region56
        $region55: #{tpu_custom_call.1} parent=11 // pred_region
          _
        $region56: #{tpu_custom_call.1} parent=11 // pred_fallthru
          _
        // Predicated region
        $region57: #{tpu_custom_call.1} parent=11 // pred_check
          %p459 = pneg %p320
        $region58: #{tpu_custom_call.1} parent=11 // pred_check_branch
          %461 = sbr.rel (%p459) target = $region60
        $region59: #{tpu_custom_call.1} parent=11 // pred_region
          _
        $region60: #{tpu_custom_call.1} parent=11 // pred_fallthru
          _
        // Predicated region
        $region61: #{tpu_custom_call.1} parent=11 // pred_check
          %p462 = pneg %p341
        $region62: #{tpu_custom_call.1} parent=11 // pred_check_branch
          %464 = sbr.rel (%p462) target = $region64
        $region63: #{tpu_custom_call.1} parent=11 // pred_region
          _
        $region64: #{tpu_custom_call.1} parent=11 // pred_fallthru
          _
        // Predicated region
        $region65: #{tpu_custom_call.1} parent=11 // pred_check
          %p465 = pneg %p362
        $region66: #{tpu_custom_call.1} parent=11 // pred_check_branch
          %467 = sbr.rel (%p465) target = $region68
        $region67: #{tpu_custom_call.1} parent=11 // pred_region
          _
        $region68: #{tpu_custom_call.1} parent=11 // pred_fallthru
          _
        // Predicated region
        $region69: #{tpu_custom_call.1} parent=11 // pred_check
          %p468 = pneg %p383
        $region70: #{tpu_custom_call.1} parent=11 // pred_check_branch
          %470 = sbr.rel (%p468) target = $region72
        $region71: #{tpu_custom_call.1} parent=11 // pred_region
          _
        $region72: #{tpu_custom_call.1} parent=11 // pred_fallthru
          _
      $region12: #{tpu_custom_call.1} parent=5 // pred_fallthru
        _
      %p471 = scmp.lt.s32.totalorder %s28, 2
      // Predicated region
      $region73: #{tpu_custom_call.1} parent=5 // pred_check
        %p472 = pneg %p471
      $region74: #{tpu_custom_call.1} parent=5 // pred_check_branch
        %474 = sbr.rel (%p472) target = $region76
      $region75: #{tpu_custom_call.1} parent=5 // pred_region
        // Predicated region
        $region77: #{tpu_custom_call.1} parent=75 // pred_check
          %p475 = pneg %p62
        $region78: #{tpu_custom_call.1} parent=75 // pred_check_branch
          %477 = sbr.rel (%p475) target = $region80
        $region79: #{tpu_custom_call.1} parent=75 // pred_region
          %s478 = sand.u32 %s52, 1
          %s479 = scalar_lea.sflag [#allocation9], %s478
          %s480 = sand.u32 %s52, 1
          %s481 = smul.addr %s480, 8
          %s482 = scalar_lea.vmem [#allocation8], %s481
          %s484 = ssub.s32 128, 128
          %485 = vsyncadd %s479, %s484
          %s486 = sadd.s32 %s36, %s35
          %s487 = smul.addr %s486, 128
          %s488 = scalar_lea.hbm %s0, %s487
          %s490 = sshll.u32 %s482, 4
          %s491 = int_to_ptr.vmem [resolvable:$true] %s490
          %493 = dma.hbm_to_vmem [thread:$0]  %s488, 128, %s491, %s479
        $region80: #{tpu_custom_call.1} parent=75 // pred_fallthru
          _
      $region76: #{tpu_custom_call.1} parent=5 // pred_fallthru
        _
      %p494 = scmp.le.s32.totalorder 1, %s28
      %p495 = scmp.lt.s32.totalorder %s28, 3
      %p496 = pnand %p494, %p495
      %p497 = pneg %p496
      // Predicated region
      $region81: #{tpu_custom_call.1} parent=5 // pred_check
        _
      $region82: #{tpu_custom_call.1} parent=5 // pred_check_branch
        %499 = sbr.rel (%p496) target = $region84
      $region83: #{tpu_custom_call.1} parent=5 // pred_region
        %s500 = ssub.s32 %s28, 1
        %s501 = sand.u32 %s55, 1
        %s502 = scalar_lea.sflag [#allocation9], %s501
        %s503 = sand.u32 %s55, 1
        %s504 = smul.addr %s503, 8
        %s505 = scalar_lea.vmem [#allocation8], %s504
        // Predicated region
        $region85: #{tpu_custom_call.1} parent=83 // pred_check
          %p506 = pneg %p68
        $region86: #{tpu_custom_call.1} parent=83 // pred_check_branch
          %508 = sbr.rel (%p506) target = $region88
        $region87: #{tpu_custom_call.1} parent=83 // pred_region
          %509 = dma.done %s502, 128
        $region88: #{tpu_custom_call.1} parent=83 // pred_fallthru
          _
        %s510 = sand.u32 %s55, 1
        %s511 = scalar_lea.sflag [#allocation9], %s510
        %s512 = sand.u32 %s55, 1
        %s513 = smul.addr %s512, 8
        %s514 = scalar_lea.vmem [#allocation8], %s513
        %p515 = pneg %p68
        %p516 = pneg %p65
        %p517 = pneg %p89
        %p518 = pneg %p86
        %p519 = pneg %p110
        %p520 = pneg %p107
        %p521 = pneg %p131
        %p522 = pneg %p128
        %p523 = pneg %p152
        %p524 = pneg %p149
        %p525 = pneg %p173
        %p526 = pneg %p170
        %p527 = pneg %p194
        %p528 = pneg %p191
        %p529 = pneg %p215
        %p530 = pneg %p212
        %p531 = pneg %p236
        %p532 = pneg %p233
        %p533 = pneg %p257
        %p534 = pneg %p254
        %p535 = pneg %p278
        %p536 = pneg %p275
        %p537 = pneg %p299
        %p538 = pneg %p296
        %p539 = pneg %p320
        %p540 = pneg %p317
        %p541 = pneg %p341
        %p542 = pneg %p338
        %p543 = pneg %p362
        %p544 = pneg %p359
        %p545 = pneg %p383
        %p546 = pneg %p380
        %p547 = pneg %p411
        %p548 = pneg %p408
        %s549 = sand.u32 %s398, 1
        %s550 = scalar_lea.sflag [#allocation10], %s549
        %s551 = sand.u32 %s398, 1
        %s552 = smul.addr %s551, 8
        %s553 = scalar_lea.vmem [#allocation11], %s552
        %p555 = scmp.eq.s32.totalorder %s38, 0
        // Predicated region
        $region89: #{tpu_custom_call.1} parent=83 // pred_check
          %p556 = pneg %p555
        $region90: #{tpu_custom_call.1} parent=83 // pred_check_branch
          %558 = sbr.rel (%p556) target = $region92
        $region91: #{tpu_custom_call.1} parent=83 // pred_region
          %vm559 = vcmask 523264
          %560 = vst.msk [vmem:[#allocation6] sm:$0xff] %vm559, 0.0
          %561 = vst.msk [vmem:[#allocation6 + $0x8] sm:$0xff] %vm559, 0.0
          %vm562 = vcmask 518144
          %563 = vst.msk [vmem:[#allocation7] sm:$0x7] %vm562, 0.0
        $region92: #{tpu_custom_call.1} parent=83 // pred_fallthru
          _
        %v564 = vld [vmem:[%s505] sm:$0xff]
        %v565 = vpack.c.bf16 %v564, %v564
        %v566 = vld [vmem:[%s1] sm:$0xff]
        %v567 = vld [vmem:[%s1 + $0x8] sm:$0xff]
        %v568 = vld [vmem:[%s1 + $0x10] sm:$0xff]
        %v569 = vld [vmem:[%s1 + $0x18] sm:$0xff]
        %v574 = vunpack.c.l.b16 %v566
        %v575 = vunpack.c.h.b16 %v566
        %v576 = vunpack.c.l.b16 %v567
        %v577 = vunpack.c.h.b16 %v567
        %v578 = vunpack.c.l.b16 %v568
        %v579 = vunpack.c.h.b16 %v568
        %v580 = vunpack.c.l.b16 %v569
        %v581 = vunpack.c.h.b16 %v569
        %v582 = vpack.c.b16 %v576, %v574
        %v583 = vpack.c.b16 %v577, %v575
        %v584 = vpack.c.b16 %v580, %v578
        %v585 = vpack.c.b16 %v581, %v579
        %vm590 = vcmask 261120
        %v592 = vsel %vm590, %v565, 0
        %594 = vmatprep.subr.bf16.mxu0 %v583
        %595 = vmatpush1.bf16.msra.mxu0 %v582
        %596 = vmatprep.subr.bf16.mxu0 %v585
        %597 = vmatpush1.bf16.msra.mxu0 %v584
        %598 = vmatprep.subr.bf16.mxu0 0
        %599 = vmatpush1.bf16.msra.mxu0 0
        %600 = vmatprep.subr.bf16.mxu0 0
        %601 = vmatpush1.bf16.msra.mxu0 0
        %602 = vmatprep.subr.bf16.mxu0 0
        %603 = vmatpush1.bf16.msra.mxu0 0
        %604 = vmatprep.subr.bf16.mxu0 0
        %605 = vmatpush1.bf16.msra.mxu0 0
        %606 = vmatprep.subr.bf16.mxu0 0
        %607 = vmatpush1.bf16.msra.mxu0 0
        %608 = vmatprep.subr.bf16.mxu0 0
        %609 = vmatpush1.bf16.msra.mxu0 0
        %610 = vmatprep.subr.bf16.mxu0 0
        %611 = vmatpush1.bf16.msra.mxu0 0
        %612 = vmatprep.subr.bf16.mxu0 0
        %613 = vmatpush1.bf16.msra.mxu0 0
        %614 = vmatprep.subr.bf16.mxu0 0
        %615 = vmatpush1.bf16.msra.mxu0 0
        %616 = vmatprep.subr.bf16.mxu0 0
        %617 = vmatpush1.bf16.msra.mxu0 0
        %618 = vmatprep.subr.bf16.mxu0 0
        %619 = vmatpush1.bf16.msra.mxu0 0
        %620 = vmatprep.subr.bf16.mxu0 0
        %621 = vmatpush1.bf16.msra.mxu0 0
        %622 = vmatprep.subr.bf16.mxu0 0
        %623 = vmatpush1.bf16.msra.mxu0 0
        %624 = vmatprep.subr.bf16.mxu0 0
        %625 = vmatpush1.bf16.msra.mxu0 0
        %626 = vmatprep.mubr.bf16.mxu0 0
        %627 = vmatmul.mubr.bf16.gmra.mrb[0].mxu0 %v592
        %v628 = vpop.f32.mrb[0].mxu0
        %v629 = vadd.f32 0.0, %v628
        %v630 = vpop.f32.mrb[0].mxu0
        %v631 = vadd.f32 0.0, %v630
        %v632 = vpop.f32.mrb[0].mxu0
        %v633 = vpop.f32.mrb[0].mxu0
        %634 = vdwg.mxu0
        %v635 = vld [vmem:[%s2] sm:$0x1]
        %v637 = vlaneseq
        %v638 = vshrl.u32 %v637, 7
        %v639 = vsub.s32 0, %v638
        %v640 = vrot.slane %v635, %v639
        %v642 = vadd.f32 %v629, %v640
        %v643 = vpack.c.bf16 %v631, %v631
        %v644 = vld [vmem:[%s3] sm:$0xf]
        %v645 = vld [vmem:[%s3 + $0x4] sm:$0xf]
        %v648 = vunpack.c.l.b16 %v644
        %v649 = vunpack.c.l.b16 %v645
        %v650 = vpack.c.b16 %v649, %v648
        %vm652 = vcmask 130048
        %v654 = vsel %vm652, %v643, 0
        %656 = vmatprep.subr.bf16.mxu0 0
        %657 = vmatpush1.bf16.msra.mxu0 %v650
        %658 = vmatprep.subr.bf16.mxu0 0
        %659 = vmatpush1.bf16.msra.mxu0 0
        %660 = vmatprep.subr.bf16.mxu0 0
        %661 = vmatpush1.bf16.msra.mxu0 0
        %662 = vmatprep.subr.bf16.mxu0 0
        %663 = vmatpush1.bf16.msra.mxu0 0
        %664 = vmatprep.subr.bf16.mxu0 0
        %665 = vmatpush1.bf16.msra.mxu0 0
        %666 = vmatprep.subr.bf16.mxu0 0
        %667 = vmatpush1.bf16.msra.mxu0 0
        %668 = vmatprep.subr.bf16.mxu0 0
        %669 = vmatpush1.bf16.msra.mxu0 0
        %670 = vmatprep.subr.bf16.mxu0 0
        %671 = vmatpush1.bf16.msra.mxu0 0
        %672 = vmatprep.subr.bf16.mxu0 0
        %673 = vmatpush1.bf16.msra.mxu0 0
        %674 = vmatprep.subr.bf16.mxu0 0
        %675 = vmatpush1.bf16.msra.mxu0 0
        %676 = vmatprep.subr.bf16.mxu0 0
        %677 = vmatpush1.bf16.msra.mxu0 0
        %678 = vmatprep.subr.bf16.mxu0 0
        %679 = vmatpush1.bf16.msra.mxu0 0
        %680 = vmatprep.subr.bf16.mxu0 0
        %681 = vmatpush1.bf16.msra.mxu0 0
        %682 = vmatprep.subr.bf16.mxu0 0
        %683 = vmatpush1.bf16.msra.mxu0 0
        %684 = vmatprep.subr.bf16.mxu0 0
        %685 = vmatpush1.bf16.msra.mxu0 0
        %686 = vmatprep.subr.bf16.mxu0 0
        %687 = vmatpush1.bf16.msra.mxu0 0
        %688 = vmatprep.mubr.bf16.mxu0 0
        %689 = vmatmul.mubr.bf16.gmra.mrb[0].mxu0 %v654
        %v690 = vpop.f32.mrb[0].mxu0
        %v691 = vadd.f32 0.0, %v690
        %v692 = vpop.f32.mrb[0].mxu0
        %v693 = vpop.f32.mrb[0].mxu0
        %v694 = vpop.f32.mrb[0].mxu0
        %695 = vdwg.mxu0
        %v696 = vadd.f32 %v642, %v691
        %v697 = vld [vmem:[#allocation7] sm:$0x7]
        %v699 = vrot.slane %v696, 5
        %vm701 = vcmask 1042432
        %v702 = vsel %vm701, %v697, %v699
        %v703 = vld [vmem:[%s4] sm:$0xf]
        %v704 = vld [vmem:[%s5] sm:$0x1]
        %v706 = vlaneseq
        %v707 = vshrl.u32 %v706, 7
        %v708 = vsub.s32 0, %v707
        %v709 = vrot.slane %v704, %v708
        %v711 = vlaneseq
        %v712 = vshrl.u32 %v711, 7
        %v713 = vsub.s32 0, %v712
        %v714 = vrot.slane %v703, %v713
        %v715 = vmul.f32 %v702, %v714
        %v716 = vadd.f32 %v709, %v715
        %v717 = vlaneseq
        %v718 = vshrl.u32 %v717, 7
        %v719 = vsub.s32 1, %v718
        %v720 = vrot.slane %v703, %v719
        %v721 = vmul.f32 %v702, %v720
        %v722 = vmul.f32 %v699, %v720
        %vm725 = vcmask 1046528
        %v726 = vrot.slane %v721, 1
        %v727 = vrot.slane %v722, 1
        %v728 = vsel %vm725, %v726, %v727
        %v730 = vadd.f32 %v716, %v728
        %v731 = vlaneseq
        %v732 = vshrl.u32 %v731, 7
        %v733 = vsub.s32 2, %v732
        %v734 = vrot.slane %v703, %v733
        %v735 = vmul.f32 %v702, %v734
        %v736 = vmul.f32 %v699, %v734
        %vm739 = vcmask 1045504
        %v740 = vrot.slane %v735, 2
        %v741 = vrot.slane %v736, 2
        %v742 = vsel %vm739, %v740, %v741
        %v744 = vadd.f32 %v730, %v742
        %v745 = vlaneseq
        %v746 = vshrl.u32 %v745, 7
        %v747 = vsub.s32 3, %v746
        %v748 = vrot.slane %v703, %v747
        %v749 = vmul.f32 %v702, %v748
        %v750 = vmul.f32 %v699, %v748
        %vm753 = vcmask 1044480
        %v754 = vrot.slane %v749, 3
        %v755 = vrot.slane %v750, 3
        %v756 = vsel %vm753, %v754, %v755
        %v758 = vadd.f32 %v744, %v756
        %vm759 = vcmask 518144
        %760 = vst.msk [vmem:[#allocation7] sm:$0x7] %vm759, %v699
        %v761 = vxor.u32 %v758, 2147483648
        %v762 = vmul.f32 %v761, 1.442695
        %v763 = vpow.pop %v762
        %v764 = vadd.f32 %v763, 1.0
        %v765 = vrcp.pop %v764
        %v766 = vmul.f32 1.0, %v765
        %v767 = vmul.f32 %v758, %v766
        %v768 = vpack.c.bf16 %v767, %v767
        %v769 = vld [vmem:[%s6] sm:$0xf]
        %v770 = vld [vmem:[%s6 + $0x4] sm:$0xf]
        %v771 = vld [vmem:[%s6 + $0x8] sm:$0xf]
        %v772 = vld [vmem:[%s6 + $0xc] sm:$0xf]
        %v773 = vld [vmem:[%s6 + $0x10] sm:$0xf]
        %v774 = vld [vmem:[%s6 + $0x14] sm:$0xf]
        %v775 = vld [vmem:[%s6 + $0x18] sm:$0xf]
        %v776 = vld [vmem:[%s6 + $0x1c] sm:$0xf]
        %v785 = vunpack.c.l.b16 %v769
        %v786 = vunpack.c.l.b16 %v770
        %v787 = vunpack.c.l.b16 %v771
        %v788 = vunpack.c.l.b16 %v772
        %v789 = vunpack.c.l.b16 %v773
        %v790 = vunpack.c.l.b16 %v774
        %v791 = vunpack.c.l.b16 %v775
        %v792 = vunpack.c.l.b16 %v776
        %v793 = vpack.c.b16 %v786, %v785
        %v794 = vpack.c.b16 %v788, %v787
        %v795 = vpack.c.b16 %v790, %v789
        %v796 = vpack.c.b16 %v792, %v791
        %vm801 = vcmask 523264
        %v803 = vsel %vm801, %v768, 0
        %805 = vmatprep.subr.bf16.mxu0 0
        %806 = vmatpush1.bf16.msra.mxu0 %v793
        %807 = vmatprep.subr.bf16.mxu0 0
        %808 = vmatpush1.bf16.msra.mxu0 %v794
        %809 = vmatprep.subr.bf16.mxu0 0
        %810 = vmatpush1.bf16.msra.mxu0 %v795
        %811 = vmatprep.subr.bf16.mxu0 0
        %812 = vmatpush1.bf16.msra.mxu0 %v796
        %813 = vmatprep.subr.bf16.mxu0 0
        %814 = vmatpush1.bf16.msra.mxu0 0
        %815 = vmatprep.subr.bf16.mxu0 0
        %816 = vmatpush1.bf16.msra.mxu0 0
        %817 = vmatprep.subr.bf16.mxu0 0
        %818 = vmatpush1.bf16.msra.mxu0 0
        %819 = vmatprep.subr.bf16.mxu0 0
        %820 = vmatpush1.bf16.msra.mxu0 0
        %821 = vmatprep.subr.bf16.mxu0 0
        %822 = vmatpush1.bf16.msra.mxu0 0
        %823 = vmatprep.subr.bf16.mxu0 0
        %824 = vmatpush1.bf16.msra.mxu0 0
        %825 = vmatprep.subr.bf16.mxu0 0
        %826 = vmatpush1.bf16.msra.mxu0 0
        %827 = vmatprep.subr.bf16.mxu0 0
        %828 = vmatpush1.bf16.msra.mxu0 0
        %829 = vmatprep.subr.bf16.mxu0 0
        %830 = vmatpush1.bf16.msra.mxu0 0
        %831 = vmatprep.subr.bf16.mxu0 0
        %832 = vmatpush1.bf16.msra.mxu0 0
        %833 = vmatprep.subr.bf16.mxu0 0
        %834 = vmatpush1.bf16.msra.mxu0 0
        %835 = vmatprep.subr.bf16.mxu0 0
        %836 = vmatpush1.bf16.msra.mxu0 0
        %837 = vmatprep.mubr.bf16.mxu0 0
        %838 = vmatmul.mubr.bf16.gmra.mrb[0].mxu0 %v803
        %v839 = vpop.f32.mrb[0].mxu0
        %v840 = vadd.f32 0.0, %v839
        %v841 = vpop.f32.mrb[0].mxu0
        %v842 = vpop.f32.mrb[0].mxu0
        %v843 = vpop.f32.mrb[0].mxu0
        %844 = vdwg.mxu0
        %v845 = vpack.c.bf16 %v840, %v840
        %v846 = vld [vmem:[%s7] sm:$0xf]
        %v847 = vld [vmem:[%s7 + $0x4] sm:$0xf]
        %v848 = vld [vmem:[%s7 + $0x8] sm:$0xf]
        %v849 = vld [vmem:[%s7 + $0xc] sm:$0xf]
        %v850 = vld [vmem:[%s7 + $0x10] sm:$0xf]
        %v851 = vld [vmem:[%s7 + $0x14] sm:$0xf]
        %v852 = vld [vmem:[%s7 + $0x18] sm:$0xf]
        %v853 = vld [vmem:[%s7 + $0x1c] sm:$0xf]
        %v854 = vld [vmem:[%s7 + $0x20] sm:$0xf]
        %v855 = vld [vmem:[%s7 + $0x24] sm:$0xf]
        %v856 = vld [vmem:[%s7 + $0x28] sm:$0xf]
        %v857 = vld [vmem:[%s7 + $0x2c] sm:$0xf]
        %v858 = vld [vmem:[%s7 + $0x30] sm:$0xf]
        %v859 = vld [vmem:[%s7 + $0x34] sm:$0xf]
        %v860 = vld [vmem:[%s7 + $0x38] sm:$0xf]
        %v861 = vld [vmem:[%s7 + $0x3c] sm:$0xf]
        %v862 = vld [vmem:[%s8] sm:$0x1]
        %v864 = vlaneseq
        %v865 = vshrl.u32 %v864, 7
        %v866 = vsub.s32 0, %v865
        %v867 = vrot.slane %v862, %v866
        %v885 = vunpack.c.l.b16 %v846
        %v886 = vunpack.c.l.b16 %v847
        %v887 = vunpack.c.l.b16 %v848
        %v888 = vunpack.c.l.b16 %v849
        %v889 = vunpack.c.l.b16 %v850
        %v890 = vunpack.c.l.b16 %v851
        %v891 = vunpack.c.l.b16 %v852
        %v892 = vunpack.c.l.b16 %v853
        %v893 = vunpack.c.l.b16 %v854
        %v894 = vunpack.c.l.b16 %v855
        %v895 = vunpack.c.l.b16 %v856
        %v896 = vunpack.c.l.b16 %v857
        %v897 = vunpack.c.l.b16 %v858
        %v898 = vunpack.c.l.b16 %v859
        %v899 = vunpack.c.l.b16 %v860
        %v900 = vunpack.c.l.b16 %v861
        %v901 = vpack.c.b16 %v886, %v885
        %v902 = vpack.c.b16 %v888, %v887
        %v903 = vpack.c.b16 %v890, %v889
        %v904 = vpack.c.b16 %v892, %v891
        %v905 = vpack.c.b16 %v894, %v893
        %v906 = vpack.c.b16 %v896, %v895
        %v907 = vpack.c.b16 %v898, %v897
        %v908 = vpack.c.b16 %v900, %v899
        %917 = vmatprep.subr.bf16.mxu0 0
        %918 = vmatpush1.bf16.msra.mxu0 %v901
        %919 = vmatprep.subr.bf16.mxu0 0
        %920 = vmatpush1.bf16.msra.mxu0 %v902
        %921 = vmatprep.subr.bf16.mxu0 0
        %922 = vmatpush1.bf16.msra.mxu0 %v903
        %923 = vmatprep.subr.bf16.mxu0 0
        %924 = vmatpush1.bf16.msra.mxu0 %v904
        %925 = vmatprep.subr.bf16.mxu0 0
        %926 = vmatpush1.bf16.msra.mxu0 %v905
        %927 = vmatprep.subr.bf16.mxu0 0
        %928 = vmatpush1.bf16.msra.mxu0 %v906
        %929 = vmatprep.subr.bf16.mxu0 0
        %930 = vmatpush1.bf16.msra.mxu0 %v907
        %931 = vmatprep.subr.bf16.mxu0 0
        %932 = vmatpush1.bf16.msra.mxu0 %v908
        %933 = vmatprep.subr.bf16.mxu0 0
        %934 = vmatpush1.bf16.msra.mxu0 0
        %935 = vmatprep.subr.bf16.mxu0 0
        %936 = vmatpush1.bf16.msra.mxu0 0
        %937 = vmatprep.subr.bf16.mxu0 0
        %938 = vmatpush1.bf16.msra.mxu0 0
        %939 = vmatprep.subr.bf16.mxu0 0
        %940 = vmatpush1.bf16.msra.mxu0 0
        %941 = vmatprep.subr.bf16.mxu0 0
        %942 = vmatpush1.bf16.msra.mxu0 0
        %943 = vmatprep.subr.bf16.mxu0 0
        %944 = vmatpush1.bf16.msra.mxu0 0
        %945 = vmatprep.subr.bf16.mxu0 0
        %946 = vmatpush1.bf16.msra.mxu0 0
        %947 = vmatprep.subr.bf16.mxu0 0
        %948 = vmatpush1.bf16.msra.mxu0 0
        %949 = vmatprep.mubr.bf16.mxu0 0
        %950 = vmatmul.mubr.bf16.gmra.mrb[0].mxu0 %v845
        %v951 = vpop.f32.mrb[0].mxu0
        %v952 = vadd.f32 %v867, %v951
        %v953 = vpop.f32.mrb[0].mxu0
        %v954 = vpop.f32.mrb[0].mxu0
        %v955 = vpop.f32.mrb[0].mxu0
        %956 = vdwg.mxu0
        %v957 = vmax.f32 %v952, 0.0
        %vm958 = vcmp.ne.f32.partialorder %v952, %v952
        %v959 = vadd.f32 %v952, 0.0
        %v960 = vand.u32 2147483647, %v952
        %v961 = vsub.f32 0.0, %v960
        %v962 = vmul.f32 %v961, 1.442695
        %v963 = vpow.pop %v962
        %v964 = vadd.f32 %v963, 1.0
        %v965 = vlog2.pop %v964
        %v966 = vmul.f32 %v965, 0.6931472
        %v967 = vmul.f32 -0.5, %v963
        %v968 = vadd.f32 %v967, 1.0
        %v969 = vmul.f32 %v968, %v963
        %v970 = vand.u32 2147483647, %v963
        %vm971 = vcmp.lt.f32.partialorder %v970, 0.0004427343
        %v972 = vsel %vm971, %v969, %v966
        %v973 = vadd.f32 %v957, %v972
        %v974 = vsel %vm958, %v959, %v973
        %v976 = vcombine.high %v974, %v974
        %v978 = vunpack.c.l.s4 1966171168
        %v979 = vunpack.c.0.s8 %v978
        %v980 = vlaneseq
        %v981 = vshrl.u32 %v980, 7
        %v982 = vsub.s32 %v979, %v981
        %v983 = vrot.slane %v974, %v982
        %v985 = vunpack.c.l.s4 1966171168
        %v986 = vunpack.c.0.s8 %v985
        %v987 = vlaneseq
        %v988 = vshrl.u32 %v987, 7
        %v989 = vsub.s32 %v986, %v988
        %v990 = vrot.slane %v976, %v989
        %v991 = vcombine.high %v983, %v983
        %v992 = vcombine.high %v990, %v990
        %v994 = vunpack.c.l.s4 1966171168
        %v995 = vunpack.c.0.s8 %v994
        %v996 = vlaneseq
        %v997 = vshrl.u32 %v996, 7
        %v998 = vsub.s32 %v995, %v997
        %v999 = vrot.slane %v983, %v998
        %v1001 = vunpack.c.l.s4 1966171168
        %v1002 = vunpack.c.0.s8 %v1001
        %v1003 = vlaneseq
        %v1004 = vshrl.u32 %v1003, 7
        %v1005 = vsub.s32 %v1002, %v1004
        %v1006 = vrot.slane %v990, %v1005
        %v1008 = vunpack.c.l.s4 1966171168
        %v1009 = vunpack.c.0.s8 %v1008
        %v1010 = vlaneseq
        %v1011 = vshrl.u32 %v1010, 7
        %v1012 = vsub.s32 %v1009, %v1011
        %v1013 = vrot.slane %v991, %v1012
        %v1015 = vunpack.c.l.s4 1966171168
        %v1016 = vunpack.c.0.s8 %v1015
        %v1017 = vlaneseq
        %v1018 = vshrl.u32 %v1017, 7
        %v1019 = vsub.s32 %v1016, %v1018
        %v1020 = vrot.slane %v992, %v1019
        %v1021 = vcombine.high %v999, %v999
        %v1022 = vcombine.high %v1006, %v1006
        %v1023 = vcombine.high %v1013, %v1013
        %v1024 = vcombine.high %v1020, %v1020
        %v1034 = vcombine.high %v767, %v767
        %v1036 = vunpack.c.l.s4 1966171168
        %v1037 = vunpack.c.0.s8 %v1036
        %v1038 = vlaneseq
        %v1039 = vshrl.u32 %v1038, 7
        %v1040 = vsub.s32 %v1037, %v1039
        %v1041 = vrot.slane %v767, %v1040
        %v1043 = vunpack.c.l.s4 1966171168
        %v1044 = vunpack.c.0.s8 %v1043
        %v1045 = vlaneseq
        %v1046 = vshrl.u32 %v1045, 7
        %v1047 = vsub.s32 %v1044, %v1046
        %v1048 = vrot.slane %v1034, %v1047
        %v1049 = vcombine.high %v1041, %v1041
        %v1050 = vcombine.high %v1048, %v1048
        %v1052 = vunpack.c.l.s4 1966171168
        %v1053 = vunpack.c.0.s8 %v1052
        %v1054 = vlaneseq
        %v1055 = vshrl.u32 %v1054, 7
        %v1056 = vsub.s32 %v1053, %v1055
        %v1057 = vrot.slane %v1041, %v1056
        %v1059 = vunpack.c.l.s4 1966171168
        %v1060 = vunpack.c.0.s8 %v1059
        %v1061 = vlaneseq
        %v1062 = vshrl.u32 %v1061, 7
        %v1063 = vsub.s32 %v1060, %v1062
        %v1064 = vrot.slane %v1048, %v1063
        %v1066 = vunpack.c.l.s4 1966171168
        %v1067 = vunpack.c.0.s8 %v1066
        %v1068 = vlaneseq
        %v1069 = vshrl.u32 %v1068, 7
        %v1070 = vsub.s32 %v1067, %v1069
        %v1071 = vrot.slane %v1049, %v1070
        %v1073 = vunpack.c.l.s4 1966171168
        %v1074 = vunpack.c.0.s8 %v1073
        %v1075 = vlaneseq
        %v1076 = vshrl.u32 %v1075, 7
        %v1077 = vsub.s32 %v1074, %v1076
        %v1078 = vrot.slane %v1050, %v1077
        %v1079 = vcombine.high %v1057, %v1057
        %v1080 = vcombine.high %v1064, %v1064
        %v1081 = vcombine.high %v1071, %v1071
        %v1082 = vcombine.high %v1078, %v1078
        %v1091 = vld [vmem:[%s9] sm:$0xff]
        %v1092 = vld [vmem:[%s9 + $0x8] sm:$0xff]
        %v1093 = vlaneseq
        %v1094 = vshrl.u32 %v1093, 7
        %v1095 = vsub.s32 0, %v1094
        %v1096 = vrot.slane %v999, %v1095
        %v1097 = vlaneseq
        %v1098 = vshrl.u32 %v1097, 7
        %v1099 = vsub.s32 0, %v1098
        %v1100 = vrot.slane %v1013, %v1099
        %v1101 = vlaneseq
        %v1102 = vshrl.u32 %v1101, 7
        %v1103 = vsub.s32 0, %v1102
        %v1104 = vrot.slane %v1021, %v1103
        %v1105 = vlaneseq
        %v1106 = vshrl.u32 %v1105, 7
        %v1107 = vsub.s32 0, %v1106
        %v1108 = vrot.slane %v1023, %v1107
        %v1109 = vlaneseq
        %v1110 = vshrl.u32 %v1109, 7
        %v1111 = vsub.s32 0, %v1110
        %v1112 = vrot.slane %v1006, %v1111
        %v1113 = vlaneseq
        %v1114 = vshrl.u32 %v1113, 7
        %v1115 = vsub.s32 0, %v1114
        %v1116 = vrot.slane %v1020, %v1115
        %v1117 = vlaneseq
        %v1118 = vshrl.u32 %v1117, 7
        %v1119 = vsub.s32 0, %v1118
        %v1120 = vrot.slane %v1022, %v1119
        %v1121 = vlaneseq
        %v1122 = vshrl.u32 %v1121, 7
        %v1123 = vsub.s32 0, %v1122
        %v1124 = vrot.slane %v1024, %v1123
        %v1133 = vmul.f32 %v1096, %v1091
        %v1134 = vmul.f32 %v1096, %v1092
        %v1135 = vmul.f32 %v1100, %v1091
        %v1136 = vmul.f32 %v1100, %v1092
        %v1137 = vmul.f32 %v1104, %v1091
        %v1138 = vmul.f32 %v1104, %v1092
        %v1139 = vmul.f32 %v1108, %v1091
        %v1140 = vmul.f32 %v1108, %v1092
        %v1141 = vmul.f32 %v1112, %v1091
        %v1142 = vmul.f32 %v1112, %v1092
        %v1143 = vmul.f32 %v1116, %v1091
        %v1144 = vmul.f32 %v1116, %v1092
        %v1145 = vmul.f32 %v1120, %v1091
        %v1146 = vmul.f32 %v1120, %v1092
        %v1147 = vmul.f32 %v1124, %v1091
        %v1148 = vmul.f32 %v1124, %v1092
        %v1149 = vmul.f32 %v1133, 1.442695
        %v1150 = vpow.pop %v1149
        %v1151 = vmul.f32 %v1134, 1.442695
        %v1152 = vpow.pop %v1151
        %v1153 = vmul.f32 %v1135, 1.442695
        %v1154 = vpow.pop %v1153
        %v1155 = vmul.f32 %v1136, 1.442695
        %v1156 = vpow.pop %v1155
        %v1157 = vmul.f32 %v1137, 1.442695
        %v1158 = vpow.pop %v1157
        %v1159 = vmul.f32 %v1138, 1.442695
        %v1160 = vpow.pop %v1159
        %v1161 = vmul.f32 %v1139, 1.442695
        %v1162 = vpow.pop %v1161
        %v1163 = vmul.f32 %v1140, 1.442695
        %v1164 = vpow.pop %v1163
        %v1165 = vmul.f32 %v1141, 1.442695
        %v1166 = vpow.pop %v1165
        %v1167 = vmul.f32 %v1142, 1.442695
        %v1168 = vpow.pop %v1167
        %v1169 = vmul.f32 %v1143, 1.442695
        %v1170 = vpow.pop %v1169
        %v1171 = vmul.f32 %v1144, 1.442695
        %v1172 = vpow.pop %v1171
        %v1173 = vmul.f32 %v1145, 1.442695
        %v1174 = vpow.pop %v1173
        %v1175 = vmul.f32 %v1146, 1.442695
        %v1176 = vpow.pop %v1175
        %v1177 = vmul.f32 %v1147, 1.442695
        %v1178 = vpow.pop %v1177
        %v1179 = vmul.f32 %v1148, 1.442695
        %v1180 = vpow.pop %v1179
        %1181 = vst.msk [vmem:[#allocation2] sm:$0xff] %vm801, %v1150
        %1182 = vst.msk [vmem:[#allocation2 + $0x8] sm:$0xff] %vm801, %v1152
        %1183 = vst.msk [vmem:[#allocation2 + $0x10] sm:$0xff] %vm801, %v1154
        %1184 = vst.msk [vmem:[#allocation2 + $0x18] sm:$0xff] %vm801, %v1156
        %1185 = vst.msk [vmem:[#allocation2 + $0x20] sm:$0xff] %vm801, %v1158
        %1186 = vst.msk [vmem:[#allocation2 + $0x28] sm:$0xff] %vm801, %v1160
        %1187 = vst.msk [vmem:[#allocation2 + $0x30] sm:$0xff] %vm801, %v1162
        %1188 = vst.msk [vmem:[#allocation2 + $0x38] sm:$0xff] %vm801, %v1164
        %1189 = vst.msk [vmem:[#allocation2 + $0x40] sm:$0xff] %vm801, %v1166
        %1190 = vst.msk [vmem:[#allocation2 + $0x48] sm:$0xff] %vm801, %v1168
        %1191 = vst.msk [vmem:[#allocation2 + $0x50] sm:$0xff] %vm801, %v1170
        %1192 = vst.msk [vmem:[#allocation2 + $0x58] sm:$0xff] %vm801, %v1172
        %1193 = vst.msk [vmem:[#allocation2 + $0x60] sm:$0xff] %vm801, %v1174
        %1194 = vst.msk [vmem:[#allocation2 + $0x68] sm:$0xff] %vm801, %v1176
        %1195 = vst.msk [vmem:[#allocation2 + $0x70] sm:$0xff] %vm801, %v1178
        %1196 = vst.msk [vmem:[#allocation2 + $0x78] sm:$0xff] %vm801, %v1180
        %v1197 = vld [vmem:[%s10] sm:$0xff]
        %v1198 = vld [vmem:[%s10 + $0x8] sm:$0xff]
        %v1199 = vlaneseq
        %v1200 = vshrl.u32 %v1199, 7
        %v1201 = vsub.s32 0, %v1200
        %v1202 = vrot.slane %v1057, %v1201
        %v1203 = vlaneseq
        %v1204 = vshrl.u32 %v1203, 7
        %v1205 = vsub.s32 0, %v1204
        %v1206 = vrot.slane %v1071, %v1205
        %v1207 = vlaneseq
        %v1208 = vshrl.u32 %v1207, 7
        %v1209 = vsub.s32 0, %v1208
        %v1210 = vrot.slane %v1079, %v1209
        %v1211 = vlaneseq
        %v1212 = vshrl.u32 %v1211, 7
        %v1213 = vsub.s32 0, %v1212
        %v1214 = vrot.slane %v1081, %v1213
        %v1215 = vlaneseq
        %v1216 = vshrl.u32 %v1215, 7
        %v1217 = vsub.s32 0, %v1216
        %v1218 = vrot.slane %v1064, %v1217
        %v1219 = vlaneseq
        %v1220 = vshrl.u32 %v1219, 7
        %v1221 = vsub.s32 0, %v1220
        %v1222 = vrot.slane %v1078, %v1221
        %v1223 = vlaneseq
        %v1224 = vshrl.u32 %v1223, 7
        %v1225 = vsub.s32 0, %v1224
        %v1226 = vrot.slane %v1080, %v1225
        %v1227 = vlaneseq
        %v1228 = vshrl.u32 %v1227, 7
        %v1229 = vsub.s32 0, %v1228
        %v1230 = vrot.slane %v1082, %v1229
        %v1239 = vmul.f32 %v1202, %v1197
        %v1240 = vmul.f32 %v1202, %v1198
        %v1241 = vmul.f32 %v1206, %v1197
        %v1242 = vmul.f32 %v1206, %v1198
        %v1243 = vmul.f32 %v1210, %v1197
        %v1244 = vmul.f32 %v1210, %v1198
        %v1245 = vmul.f32 %v1214, %v1197
        %v1246 = vmul.f32 %v1214, %v1198
        %v1247 = vmul.f32 %v1218, %v1197
        %v1248 = vmul.f32 %v1218, %v1198
        %v1249 = vmul.f32 %v1222, %v1197
        %v1250 = vmul.f32 %v1222, %v1198
        %v1251 = vmul.f32 %v1226, %v1197
        %v1252 = vmul.f32 %v1226, %v1198
        %v1253 = vmul.f32 %v1230, %v1197
        %v1254 = vmul.f32 %v1230, %v1198
        %v1255 = vsel %vm801, %v1239, 0.0
        %1256 = vadd.xlane.f32.xlu0 %v1255
        %v1257 = vpop.xlane.xlu0 %1256
        %v1258 = vsel %vm801, %v1240, 0.0
        %1259 = vadd.xlane.f32.xlu0 %v1258
        %v1260 = vpop.xlane.xlu0 %1259
        %v1261 = vsel %vm801, %v1241, 0.0
        %1262 = vadd.xlane.f32.xlu0 %v1261
        %v1263 = vpop.xlane.xlu0 %1262
        %v1264 = vsel %vm801, %v1242, 0.0
        %1265 = vadd.xlane.f32.xlu0 %v1264
        %v1266 = vpop.xlane.xlu0 %1265
        %v1267 = vsel %vm801, %v1243, 0.0
        %1268 = vadd.xlane.f32.xlu0 %v1267
        %v1269 = vpop.xlane.xlu0 %1268
        %v1270 = vsel %vm801, %v1244, 0.0
        %1271 = vadd.xlane.f32.xlu0 %v1270
        %v1272 = vpop.xlane.xlu0 %1271
        %v1273 = vsel %vm801, %v1245, 0.0
        %1274 = vadd.xlane.f32.xlu0 %v1273
        %v1275 = vpop.xlane.xlu0 %1274
        %v1276 = vsel %vm801, %v1246, 0.0
        %1277 = vadd.xlane.f32.xlu0 %v1276
        %v1278 = vpop.xlane.xlu0 %1277
        %v1279 = vsel %vm801, %v1247, 0.0
        %1280 = vadd.xlane.f32.xlu0 %v1279
        %v1281 = vpop.xlane.xlu0 %1280
        %v1282 = vsel %vm801, %v1248, 0.0
        %1283 = vadd.xlane.f32.xlu0 %v1282
        %v1284 = vpop.xlane.xlu0 %1283
        %v1285 = vsel %vm801, %v1249, 0.0
        %1286 = vadd.xlane.f32.xlu0 %v1285
        %v1287 = vpop.xlane.xlu0 %1286
        %v1288 = vsel %vm801, %v1250, 0.0
        %1289 = vadd.xlane.f32.xlu0 %v1288
        %v1290 = vpop.xlane.xlu0 %1289
        %v1291 = vsel %vm801, %v1251, 0.0
        %1292 = vadd.xlane.f32.xlu0 %v1291
        %v1293 = vpop.xlane.xlu0 %1292
        %v1294 = vsel %vm801, %v1252, 0.0
        %1295 = vadd.xlane.f32.xlu0 %v1294
        %v1296 = vpop.xlane.xlu0 %1295
        %v1297 = vsel %vm801, %v1253, 0.0
        %1298 = vadd.xlane.f32.xlu0 %v1297
        %v1299 = vpop.xlane.xlu0 %1298
        %v1300 = vsel %vm801, %v1254, 0.0
        %1301 = vadd.xlane.f32.xlu0 %v1300
        %v1302 = vpop.xlane.xlu0 %1301
        %v1303 = vmul.f32 %v999, %v1057
        %v1304 = vmul.f32 %v1013, %v1071
        %v1305 = vmul.f32 %v1021, %v1079
        %v1306 = vmul.f32 %v1023, %v1081
        %v1307 = vmul.f32 %v1006, %v1064
        %v1308 = vmul.f32 %v1020, %v1078
        %v1309 = vmul.f32 %v1022, %v1080
        %v1310 = vmul.f32 %v1024, %v1082
        %v1319 = vlaneseq
        %v1320 = vshrl.u32 %v1319, 7
        %v1321 = vsub.s32 0, %v1320
        %v1322 = vrot.slane %v1303, %v1321
        %v1323 = vlaneseq
        %v1324 = vshrl.u32 %v1323, 7
        %v1325 = vsub.s32 0, %v1324
        %v1326 = vrot.slane %v1304, %v1325
        %v1327 = vlaneseq
        %v1328 = vshrl.u32 %v1327, 7
        %v1329 = vsub.s32 0, %v1328
        %v1330 = vrot.slane %v1305, %v1329
        %v1331 = vlaneseq
        %v1332 = vshrl.u32 %v1331, 7
        %v1333 = vsub.s32 0, %v1332
        %v1334 = vrot.slane %v1306, %v1333
        %v1335 = vlaneseq
        %v1336 = vshrl.u32 %v1335, 7
        %v1337 = vsub.s32 0, %v1336
        %v1338 = vrot.slane %v1307, %v1337
        %v1339 = vlaneseq
        %v1340 = vshrl.u32 %v1339, 7
        %v1341 = vsub.s32 0, %v1340
        %v1342 = vrot.slane %v1308, %v1341
        %v1343 = vlaneseq
        %v1344 = vshrl.u32 %v1343, 7
        %v1345 = vsub.s32 0, %v1344
        %v1346 = vrot.slane %v1309, %v1345
        %v1347 = vlaneseq
        %v1348 = vshrl.u32 %v1347, 7
        %v1349 = vsub.s32 0, %v1348
        %v1350 = vrot.slane %v1310, %v1349
        %v1359 = vmul.f32 %v1322, %v1257
        %v1360 = vmul.f32 %v1322, %v1260
        %v1361 = vmul.f32 %v1326, %v1263
        %v1362 = vmul.f32 %v1326, %v1266
        %v1363 = vmul.f32 %v1330, %v1269
        %v1364 = vmul.f32 %v1330, %v1272
        %v1365 = vmul.f32 %v1334, %v1275
        %v1366 = vmul.f32 %v1334, %v1278
        %v1367 = vmul.f32 %v1338, %v1281
        %v1368 = vmul.f32 %v1338, %v1284
        %v1369 = vmul.f32 %v1342, %v1287
        %v1370 = vmul.f32 %v1342, %v1290
        %v1371 = vmul.f32 %v1346, %v1293
        %v1372 = vmul.f32 %v1346, %v1296
        %v1373 = vmul.f32 %v1350, %v1299
        %v1374 = vmul.f32 %v1350, %v1302
        %1375 = vst.msk [vmem:[#allocation3] sm:$0xff] %vm801, %v1359
        %1376 = vst.msk [vmem:[#allocation3 + $0x8] sm:$0xff] %vm801, %v1360
        %1377 = vst.msk [vmem:[#allocation3 + $0x10] sm:$0xff] %vm801, %v1361
        %1378 = vst.msk [vmem:[#allocation3 + $0x18] sm:$0xff] %vm801, %v1362
        %1379 = vst.msk [vmem:[#allocation3 + $0x20] sm:$0xff] %vm801, %v1363
        %1380 = vst.msk [vmem:[#allocation3 + $0x28] sm:$0xff] %vm801, %v1364
        %1381 = vst.msk [vmem:[#allocation3 + $0x30] sm:$0xff] %vm801, %v1365
        %1382 = vst.msk [vmem:[#allocation3 + $0x38] sm:$0xff] %vm801, %v1366
        %1383 = vst.msk [vmem:[#allocation3 + $0x40] sm:$0xff] %vm801, %v1367
        %1384 = vst.msk [vmem:[#allocation3 + $0x48] sm:$0xff] %vm801, %v1368
        %1385 = vst.msk [vmem:[#allocation3 + $0x50] sm:$0xff] %vm801, %v1369
        %1386 = vst.msk [vmem:[#allocation3 + $0x58] sm:$0xff] %vm801, %v1370
        %1387 = vst.msk [vmem:[#allocation3 + $0x60] sm:$0xff] %vm801, %v1371
        %1388 = vst.msk [vmem:[#allocation3 + $0x68] sm:$0xff] %vm801, %v1372
        %1389 = vst.msk [vmem:[#allocation3 + $0x70] sm:$0xff] %vm801, %v1373
        %1390 = vst.msk [vmem:[#allocation3 + $0x78] sm:$0xff] %vm801, %v1374
        %v1391 = vld [vmem:[%s11] sm:$0xff]
        %v1392 = vld [vmem:[%s11 + $0x8] sm:$0xff]
        %v1393 = vmul.f32 %v1202, %v1391
        %v1394 = vmul.f32 %v1202, %v1392
        %v1395 = vmul.f32 %v1206, %v1391
        %v1396 = vmul.f32 %v1206, %v1392
        %v1397 = vmul.f32 %v1210, %v1391
        %v1398 = vmul.f32 %v1210, %v1392
        %v1399 = vmul.f32 %v1214, %v1391
        %v1400 = vmul.f32 %v1214, %v1392
        %v1401 = vmul.f32 %v1218, %v1391
        %v1402 = vmul.f32 %v1218, %v1392
        %v1403 = vmul.f32 %v1222, %v1391
        %v1404 = vmul.f32 %v1222, %v1392
        %v1405 = vmul.f32 %v1226, %v1391
        %v1406 = vmul.f32 %v1226, %v1392
        %v1407 = vmul.f32 %v1230, %v1391
        %v1408 = vmul.f32 %v1230, %v1392
        %v1409 = vsel %vm801, %v1393, 0.0
        %1410 = vadd.xlane.f32.xlu0 %v1409
        %v1411 = vpop.xlane.xlu0 %1410
        %v1412 = vsel %vm801, %v1394, 0.0
        %1413 = vadd.xlane.f32.xlu0 %v1412
        %v1414 = vpop.xlane.xlu0 %1413
        %v1415 = vsel %vm801, %v1395, 0.0
        %1416 = vadd.xlane.f32.xlu0 %v1415
        %v1417 = vpop.xlane.xlu0 %1416
        %v1418 = vsel %vm801, %v1396, 0.0
        %1419 = vadd.xlane.f32.xlu0 %v1418
        %v1420 = vpop.xlane.xlu0 %1419
        %v1421 = vsel %vm801, %v1397, 0.0
        %1422 = vadd.xlane.f32.xlu0 %v1421
        %v1423 = vpop.xlane.xlu0 %1422
        %v1424 = vsel %vm801, %v1398, 0.0
        %1425 = vadd.xlane.f32.xlu0 %v1424
        %v1426 = vpop.xlane.xlu0 %1425
        %v1427 = vsel %vm801, %v1399, 0.0
        %1428 = vadd.xlane.f32.xlu0 %v1427
        %v1429 = vpop.xlane.xlu0 %1428
        %v1430 = vsel %vm801, %v1400, 0.0
        %1431 = vadd.xlane.f32.xlu0 %v1430
        %v1432 = vpop.xlane.xlu0 %1431
        %v1433 = vsel %vm801, %v1401, 0.0
        %1434 = vadd.xlane.f32.xlu0 %v1433
        %v1435 = vpop.xlane.xlu0 %1434
        %v1436 = vsel %vm801, %v1402, 0.0
        %1437 = vadd.xlane.f32.xlu0 %v1436
        %v1438 = vpop.xlane.xlu0 %1437
        %v1439 = vsel %vm801, %v1403, 0.0
        %1440 = vadd.xlane.f32.xlu0 %v1439
        %v1441 = vpop.xlane.xlu0 %1440
        %v1442 = vsel %vm801, %v1404, 0.0
        %1443 = vadd.xlane.f32.xlu0 %v1442
        %v1444 = vpop.xlane.xlu0 %1443
        %v1445 = vsel %vm801, %v1405, 0.0
        %1446 = vadd.xlane.f32.xlu0 %v1445
        %v1447 = vpop.xlane.xlu0 %1446
        %v1448 = vsel %vm801, %v1406, 0.0
        %1449 = vadd.xlane.f32.xlu0 %v1448
        %v1450 = vpop.xlane.xlu0 %1449
        %v1451 = vsel %vm801, %v1407, 0.0
        %1452 = vadd.xlane.f32.xlu0 %v1451
        %v1453 = vpop.xlane.xlu0 %1452
        %v1454 = vsel %vm801, %v1408, 0.0
        %1455 = vadd.xlane.f32.xlu0 %v1454
        %v1456 = vpop.xlane.xlu0 %1455
        %vm1457 = vcmask 7168
        %1458 = vst.msk [vmem:[#allocation4] sm:$0xff] %vm1457, %v1411
        %1459 = vst.msk [vmem:[#allocation4 + $0x8] sm:$0xff] %vm1457, %v1414
        %1460 = vst.msk [vmem:[#allocation4 + $0x10] sm:$0xff] %vm1457, %v1417
        %1461 = vst.msk [vmem:[#allocation4 + $0x18] sm:$0xff] %vm1457, %v1420
        %1462 = vst.msk [vmem:[#allocation4 + $0x20] sm:$0xff] %vm1457, %v1423
        %1463 = vst.msk [vmem:[#allocation4 + $0x28] sm:$0xff] %vm1457, %v1426
        %1464 = vst.msk [vmem:[#allocation4 + $0x30] sm:$0xff] %vm1457, %v1429
        %1465 = vst.msk [vmem:[#allocation4 + $0x38] sm:$0xff] %vm1457, %v1432
        %1466 = vst.msk [vmem:[#allocation4 + $0x40] sm:$0xff] %vm1457, %v1435
        %1467 = vst.msk [vmem:[#allocation4 + $0x48] sm:$0xff] %vm1457, %v1438
        %1468 = vst.msk [vmem:[#allocation4 + $0x50] sm:$0xff] %vm1457, %v1441
        %1469 = vst.msk [vmem:[#allocation4 + $0x58] sm:$0xff] %vm1457, %v1444
        %1470 = vst.msk [vmem:[#allocation4 + $0x60] sm:$0xff] %vm1457, %v1447
        %1471 = vst.msk [vmem:[#allocation4 + $0x68] sm:$0xff] %vm1457, %v1450
        %1472 = vst.msk [vmem:[#allocation4 + $0x70] sm:$0xff] %vm1457, %v1453
        %1473 = vst.msk [vmem:[#allocation4 + $0x78] sm:$0xff] %vm1457, %v1456
        %v1474 = vld [vmem:[#allocation6] sm:$0xff]
        %v1475 = vld [vmem:[#allocation6 + $0x8] sm:$0xff]
        %s1476 = smul.u32 0, 16
        %s1477 = scalar_lea.vmem [#allocation2], %s1476
        %v1478 = vld [vmem:[%s1477] sm:$0xff]
        %v1479 = vld [vmem:[%s1477 + $0x8] sm:$0xff]
        %v1480 = vmul.f32 %v1478, %v1474
        %v1481 = vmul.f32 %v1479, %v1475
        %s1482 = scalar_lea.vmem [#allocation3], %s1476
        %v1483 = vld [vmem:[%s1482] sm:$0xff]
        %v1484 = vld [vmem:[%s1482 + $0x8] sm:$0xff]
        %v1485 = vadd.f32 %v1480, %v1483
        %v1486 = vadd.f32 %v1481, %v1484
        %s1487 = scalar_lea.vmem [#allocation4], %s1476
        %v1488 = vld [vmem:[%s1487] sm:$0xff]
        %v1489 = vld [vmem:[%s1487 + $0x8] sm:$0xff]
        %1491 = vset.pattern.permute.xlu0 0
        %1492 = vperm.xlu0 %1491, %v1488
        %v1493 = vpop.permute.xlu0 %1492
        %1496 = vset.pattern.permute.xlu0 0
        %1497 = vperm.xlu0 %1496, %v1489
        %v1498 = vpop.permute.xlu0 %1497
        %v1500 = vmul.f32 %v1485, %v1493
        %v1501 = vmul.f32 %v1486, %v1498
        %v1502 = vsel %vm801, %v1500, 0.0
        %v1503 = vsel %vm801, %v1501, 0.0
        %v1504 = vadd.f32 %v1502, %v1503
        %v1505 = vrot.slane %v1504, 4
        %v1506 = vadd.f32 %v1504, %v1505
        %v1507 = vrot.slane %v1506, 2
        %v1508 = vadd.f32 %v1506, %v1507
        %v1509 = vrot.slane %v1508, 1
        %v1510 = vadd.f32 %v1508, %v1509
        %s1511 = sadd.s32 0, 1
        %s1512 = smul.u32 %s1511, 16
        %s1513 = scalar_lea.vmem [#allocation2], %s1512
        %v1514 = vld [vmem:[%s1513] sm:$0xff]
        %v1515 = vld [vmem:[%s1513 + $0x8] sm:$0xff]
        %v1516 = vmul.f32 %v1514, %v1485
        %v1517 = vmul.f32 %v1515, %v1486
        %s1518 = scalar_lea.vmem [#allocation3], %s1512
        %v1519 = vld [vmem:[%s1518] sm:$0xff]
        %v1520 = vld [vmem:[%s1518 + $0x8] sm:$0xff]
        %v1521 = vadd.f32 %v1516, %v1519
        %v1522 = vadd.f32 %v1517, %v1520
        %s1523 = scalar_lea.vmem [#allocation4], %s1512
        %v1524 = vld [vmem:[%s1523] sm:$0xff]
        %v1525 = vld [vmem:[%s1523 + $0x8] sm:$0xff]
        %1527 = vset.pattern.permute.xlu0 0
        %1528 = vperm.xlu0 %1527, %v1524
        %v1529 = vpop.permute.xlu0 %1528
        %1532 = vset.pattern.permute.xlu0 0
        %1533 = vperm.xlu0 %1532, %v1525
        %v1534 = vpop.permute.xlu0 %1533
        %v1536 = vmul.f32 %v1521, %v1529
        %v1537 = vmul.f32 %v1522, %v1534
        %v1538 = vsel %vm801, %v1536, 0.0
        %v1539 = vsel %vm801, %v1537, 0.0
        %v1540 = vadd.f32 %v1538, %v1539
        %v1541 = vrot.slane %v1540, 4
        %v1542 = vadd.f32 %v1540, %v1541
        %v1543 = vrot.slane %v1542, 2
        %v1544 = vadd.f32 %v1542, %v1543
        %v1545 = vrot.slane %v1544, 1
        %v1546 = vadd.f32 %v1544, %v1545
        %s1547 = sadd.s32 0, 2
        %s1548 = smul.u32 %s1547, 16
        %s1549 = scalar_lea.vmem [#allocation2], %s1548
        %v1550 = vld [vmem:[%s1549] sm:$0xff]
        %v1551 = vld [vmem:[%s1549 + $0x8] sm:$0xff]
        %v1552 = vmul.f32 %v1550, %v1521
        %v1553 = vmul.f32 %v1551, %v1522
        %s1554 = scalar_lea.vmem [#allocation3], %s1548
        %v1555 = vld [vmem:[%s1554] sm:$0xff]
        %v1556 = vld [vmem:[%s1554 + $0x8] sm:$0xff]
        %v1557 = vadd.f32 %v1552, %v1555
        %v1558 = vadd.f32 %v1553, %v1556
        %s1559 = scalar_lea.vmem [#allocation4], %s1548
        %v1560 = vld [vmem:[%s1559] sm:$0xff]
        %v1561 = vld [vmem:[%s1559 + $0x8] sm:$0xff]
        %1563 = vset.pattern.permute.xlu0 0
        %1564 = vperm.xlu0 %1563, %v1560
        %v1565 = vpop.permute.xlu0 %1564
        %1568 = vset.pattern.permute.xlu0 0
        %1569 = vperm.xlu0 %1568, %v1561
        %v1570 = vpop.permute.xlu0 %1569
        %v1572 = vmul.f32 %v1557, %v1565
        %v1573 = vmul.f32 %v1558, %v1570
        %v1574 = vsel %vm801, %v1572, 0.0
        %v1575 = vsel %vm801, %v1573, 0.0
        %v1576 = vadd.f32 %v1574, %v1575
        %v1577 = vrot.slane %v1576, 4
        %v1578 = vadd.f32 %v1576, %v1577
        %v1579 = vrot.slane %v1578, 2
        %v1580 = vadd.f32 %v1578, %v1579
        %v1581 = vrot.slane %v1580, 1
        %v1582 = vadd.f32 %v1580, %v1581
        %s1583 = sadd.s32 0, 3
        %s1584 = smul.u32 %s1583, 16
        %s1585 = scalar_lea.vmem [#allocation2], %s1584
        %v1586 = vld [vmem:[%s1585] sm:$0xff]
        %v1587 = vld [vmem:[%s1585 + $0x8] sm:$0xff]
        %v1588 = vmul.f32 %v1586, %v1557
        %v1589 = vmul.f32 %v1587, %v1558
        %s1590 = scalar_lea.vmem [#allocation3], %s1584
        %v1591 = vld [vmem:[%s1590] sm:$0xff]
        %v1592 = vld [vmem:[%s1590 + $0x8] sm:$0xff]
        %v1593 = vadd.f32 %v1588, %v1591
        %v1594 = vadd.f32 %v1589, %v1592
        %s1595 = scalar_lea.vmem [#allocation4], %s1584
        %v1596 = vld [vmem:[%s1595] sm:$0xff]
        %v1597 = vld [vmem:[%s1595 + $0x8] sm:$0xff]
        %1599 = vset.pattern.permute.xlu0 0
        %1600 = vperm.xlu0 %1599, %v1596
        %v1601 = vpop.permute.xlu0 %1600
        %1604 = vset.pattern.permute.xlu0 0
        %1605 = vperm.xlu0 %1604, %v1597
        %v1606 = vpop.permute.xlu0 %1605
        %v1608 = vmul.f32 %v1593, %v1601
        %v1609 = vmul.f32 %v1594, %v1606
        %v1610 = vsel %vm801, %v1608, 0.0
        %v1611 = vsel %vm801, %v1609, 0.0
        %v1612 = vadd.f32 %v1610, %v1611
        %v1613 = vrot.slane %v1612, 4
        %v1614 = vadd.f32 %v1612, %v1613
        %v1615 = vrot.slane %v1614, 2
        %v1616 = vadd.f32 %v1614, %v1615
        %v1617 = vrot.slane %v1616, 1
        %v1618 = vadd.f32 %v1616, %v1617
        %s1619 = sadd.s32 0, 4
        %s1620 = smul.u32 %s1619, 16
        %s1621 = scalar_lea.vmem [#allocation2], %s1620
        %v1622 = vld [vmem:[%s1621] sm:$0xff]
        %v1623 = vld [vmem:[%s1621 + $0x8] sm:$0xff]
        %v1624 = vmul.f32 %v1622, %v1593
        %v1625 = vmul.f32 %v1623, %v1594
        %s1626 = scalar_lea.vmem [#allocation3], %s1620
        %v1627 = vld [vmem:[%s1626] sm:$0xff]
        %v1628 = vld [vmem:[%s1626 + $0x8] sm:$0xff]
        %v1629 = vadd.f32 %v1624, %v1627
        %v1630 = vadd.f32 %v1625, %v1628
        %s1631 = scalar_lea.vmem [#allocation4], %s1620
        %v1632 = vld [vmem:[%s1631] sm:$0xff]
        %v1633 = vld [vmem:[%s1631 + $0x8] sm:$0xff]
        %1635 = vset.pattern.permute.xlu0 0
        %1636 = vperm.xlu0 %1635, %v1632
        %v1637 = vpop.permute.xlu0 %1636
        %1640 = vset.pattern.permute.xlu0 0
        %1641 = vperm.xlu0 %1640, %v1633
        %v1642 = vpop.permute.xlu0 %1641
        %v1644 = vmul.f32 %v1629, %v1637
        %v1645 = vmul.f32 %v1630, %v1642
        %v1646 = vsel %vm801, %v1644, 0.0
        %v1647 = vsel %vm801, %v1645, 0.0
        %v1648 = vadd.f32 %v1646, %v1647
        %v1649 = vrot.slane %v1648, 4
        %v1650 = vadd.f32 %v1648, %v1649
        %v1651 = vrot.slane %v1650, 2
        %v1652 = vadd.f32 %v1650, %v1651
        %v1653 = vrot.slane %v1652, 1
        %v1654 = vadd.f32 %v1652, %v1653
        %s1655 = sadd.s32 0, 5
        %s1656 = smul.u32 %s1655, 16
        %s1657 = scalar_lea.vmem [#allocation2], %s1656
        %v1658 = vld [vmem:[%s1657] sm:$0xff]
        %v1659 = vld [vmem:[%s1657 + $0x8] sm:$0xff]
        %v1660 = vmul.f32 %v1658, %v1629
        %v1661 = vmul.f32 %v1659, %v1630
        %s1662 = scalar_lea.vmem [#allocation3], %s1656
        %v1663 = vld [vmem:[%s1662] sm:$0xff]
        %v1664 = vld [vmem:[%s1662 + $0x8] sm:$0xff]
        %v1665 = vadd.f32 %v1660, %v1663
        %v1666 = vadd.f32 %v1661, %v1664
        %s1667 = scalar_lea.vmem [#allocation4], %s1656
        %v1668 = vld [vmem:[%s1667] sm:$0xff]
        %v1669 = vld [vmem:[%s1667 + $0x8] sm:$0xff]
        %1671 = vset.pattern.permute.xlu0 0
        %1672 = vperm.xlu0 %1671, %v1668
        %v1673 = vpop.permute.xlu0 %1672
        %1676 = vset.pattern.permute.xlu0 0
        %1677 = vperm.xlu0 %1676, %v1669
        %v1678 = vpop.permute.xlu0 %1677
        %v1680 = vmul.f32 %v1665, %v1673
        %v1681 = vmul.f32 %v1666, %v1678
        %v1682 = vsel %vm801, %v1680, 0.0
        %v1683 = vsel %vm801, %v1681, 0.0
        %v1684 = vadd.f32 %v1682, %v1683
        %v1685 = vrot.slane %v1684, 4
        %v1686 = vadd.f32 %v1684, %v1685
        %v1687 = vrot.slane %v1686, 2
        %v1688 = vadd.f32 %v1686, %v1687
        %v1689 = vrot.slane %v1688, 1
        %v1690 = vadd.f32 %v1688, %v1689
        %s1691 = sadd.s32 0, 6
        %s1692 = smul.u32 %s1691, 16
        %s1693 = scalar_lea.vmem [#allocation2], %s1692
        %v1694 = vld [vmem:[%s1693] sm:$0xff]
        %v1695 = vld [vmem:[%s1693 + $0x8] sm:$0xff]
        %v1696 = vmul.f32 %v1694, %v1665
        %v1697 = vmul.f32 %v1695, %v1666
        %s1698 = scalar_lea.vmem [#allocation3], %s1692
        %v1699 = vld [vmem:[%s1698] sm:$0xff]
        %v1700 = vld [vmem:[%s1698 + $0x8] sm:$0xff]
        %v1701 = vadd.f32 %v1696, %v1699
        %v1702 = vadd.f32 %v1697, %v1700
        %s1703 = scalar_lea.vmem [#allocation4], %s1692
        %v1704 = vld [vmem:[%s1703] sm:$0xff]
        %v1705 = vld [vmem:[%s1703 + $0x8] sm:$0xff]
        %1707 = vset.pattern.permute.xlu0 0
        %1708 = vperm.xlu0 %1707, %v1704
        %v1709 = vpop.permute.xlu0 %1708
        %1712 = vset.pattern.permute.xlu0 0
        %1713 = vperm.xlu0 %1712, %v1705
        %v1714 = vpop.permute.xlu0 %1713
        %v1716 = vmul.f32 %v1701, %v1709
        %v1717 = vmul.f32 %v1702, %v1714
        %v1718 = vsel %vm801, %v1716, 0.0
        %v1719 = vsel %vm801, %v1717, 0.0
        %v1720 = vadd.f32 %v1718, %v1719
        %v1721 = vrot.slane %v1720, 4
        %v1722 = vadd.f32 %v1720, %v1721
        %v1723 = vrot.slane %v1722, 2
        %v1724 = vadd.f32 %v1722, %v1723
        %v1725 = vrot.slane %v1724, 1
        %v1726 = vadd.f32 %v1724, %v1725
        %s1727 = sadd.s32 0, 7
        %s1728 = smul.u32 %s1727, 16
        %s1729 = scalar_lea.vmem [#allocation2], %s1728
        %v1730 = vld [vmem:[%s1729] sm:$0xff]
        %v1731 = vld [vmem:[%s1729 + $0x8] sm:$0xff]
        %v1732 = vmul.f32 %v1730, %v1701
        %v1733 = vmul.f32 %v1731, %v1702
        %s1734 = scalar_lea.vmem [#allocation3], %s1728
        %v1735 = vld [vmem:[%s1734] sm:$0xff]
        %v1736 = vld [vmem:[%s1734 + $0x8] sm:$0xff]
        %v1737 = vadd.f32 %v1732, %v1735
        %v1738 = vadd.f32 %v1733, %v1736
        %s1739 = scalar_lea.vmem [#allocation4], %s1728
        %v1740 = vld [vmem:[%s1739] sm:$0xff]
        %v1741 = vld [vmem:[%s1739 + $0x8] sm:$0xff]
        %1743 = vset.pattern.permute.xlu0 0
        %1744 = vperm.xlu0 %1743, %v1740
        %v1745 = vpop.permute.xlu0 %1744
        %1748 = vset.pattern.permute.xlu0 0
        %1749 = vperm.xlu0 %1748, %v1741
        %v1750 = vpop.permute.xlu0 %1749
        %v1752 = vmul.f32 %v1737, %v1745
        %v1753 = vmul.f32 %v1738, %v1750
        %v1754 = vsel %vm801, %v1752, 0.0
        %v1755 = vsel %vm801, %v1753, 0.0
        %v1756 = vadd.f32 %v1754, %v1755
        %v1757 = vrot.slane %v1756, 4
        %v1758 = vadd.f32 %v1756, %v1757
        %v1759 = vrot.slane %v1758, 2
        %v1760 = vadd.f32 %v1758, %v1759
        %v1761 = vrot.slane %v1760, 1
        %v1762 = vadd.f32 %v1760, %v1761
        %vm1763 = vcmask 1040384
        %v1764 = vsel %vm1763, %v1510, %v1546
        %vm1765 = vcmask 1041408
        %v1766 = vsel %vm1765, %v1764, %v1582
        %v1767 = vsel %vm701, %v1766, %v1618
        %vm1768 = vcmask 1043456
        %v1769 = vsel %vm1768, %v1767, %v1654
        %v1770 = vsel %vm753, %v1769, %v1690
        %v1771 = vsel %vm739, %v1770, %v1726
        %v1772 = vsel %vm725, %v1771, %v1762
        %1773 = vst.msk [vmem:[#allocation5] sm:$0xff] %vm801, %v1772
        %1774 = vst.msk [vmem:[#allocation6] sm:$0xff] %vm801, %v1737
        %1775 = vst.msk [vmem:[#allocation6 + $0x8] sm:$0xff] %vm801, %v1738
        %v1776 = vld [vmem:[#allocation5] sm:$0xff]
        %v1777 = vld [vmem:[%s12] sm:$0x1]
        %v1779 = vlaneseq
        %v1780 = vshrl.u32 %v1779, 7
        %v1781 = vsub.s32 0, %v1780
        %v1782 = vrot.slane %v1777, %v1781
        %v1784 = vmul.f32 %v1782, %v767
        %v1785 = vadd.f32 %v1776, %v1784
        %v1786 = vxor.u32 %v696, 2147483648
        %v1787 = vmul.f32 %v1786, 1.442695
        %v1788 = vpow.pop %v1787
        %v1789 = vadd.f32 %v1788, 1.0
        %v1790 = vrcp.pop %v1789
        %v1791 = vmul.f32 1.0, %v1790
        %v1792 = vmul.f32 %v696, %v1791
        %1794 = vrot.lane.b32.xlu0 %v1792, 64
        %v1795 = vpop.permute.xlu0 %1794
        %v1797 = vmul.f32 %v1785, %v1795
        %v1798 = vpack.c.bf16 %v1797, %v1797
        %v1799 = vld [vmem:[%s13] sm:$0xf]
        %v1800 = vld [vmem:[%s13 + $0x4] sm:$0xf]
        %v1801 = vld [vmem:[%s13 + $0x8] sm:$0xf]
        %v1802 = vld [vmem:[%s13 + $0xc] sm:$0xf]
        %v1803 = vld [vmem:[%s13 + $0x10] sm:$0xf]
        %v1804 = vld [vmem:[%s13 + $0x14] sm:$0xf]
        %v1805 = vld [vmem:[%s13 + $0x18] sm:$0xf]
        %v1806 = vld [vmem:[%s13 + $0x1c] sm:$0xf]
        %v1815 = vunpack.c.l.b16 %v1799
        %v1816 = vunpack.c.l.b16 %v1800
        %v1817 = vunpack.c.l.b16 %v1801
        %v1818 = vunpack.c.l.b16 %v1802
        %v1819 = vunpack.c.l.b16 %v1803
        %v1820 = vunpack.c.l.b16 %v1804
        %v1821 = vunpack.c.l.b16 %v1805
        %v1822 = vunpack.c.l.b16 %v1806
        %v1823 = vpack.c.b16 %v1816, %v1815
        %v1824 = vpack.c.b16 %v1818, %v1817
        %v1825 = vpack.c.b16 %v1820, %v1819
        %v1826 = vpack.c.b16 %v1822, %v1821
        %v1832 = vsel %vm801, %v1798, 0
        %1834 = vmatprep.subr.bf16.mxu0 0
        %1835 = vmatpush1.bf16.msra.mxu0 %v1823
        %1836 = vmatprep.subr.bf16.mxu0 0
        %1837 = vmatpush1.bf16.msra.mxu0 %v1824
        %1838 = vmatprep.subr.bf16.mxu0 0
        %1839 = vmatpush1.bf16.msra.mxu0 %v1825
        %1840 = vmatprep.subr.bf16.mxu0 0
        %1841 = vmatpush1.bf16.msra.mxu0 %v1826
        %1842 = vmatprep.subr.bf16.mxu0 0
        %1843 = vmatpush1.bf16.msra.mxu0 0
        %1844 = vmatprep.subr.bf16.mxu0 0
        %1845 = vmatpush1.bf16.msra.mxu0 0
        %1846 = vmatprep.subr.bf16.mxu0 0
        %1847 = vmatpush1.bf16.msra.mxu0 0
        %1848 = vmatprep.subr.bf16.mxu0 0
        %1849 = vmatpush1.bf16.msra.mxu0 0
        %1850 = vmatprep.subr.bf16.mxu0 0
        %1851 = vmatpush1.bf16.msra.mxu0 0
        %1852 = vmatprep.subr.bf16.mxu0 0
        %1853 = vmatpush1.bf16.msra.mxu0 0
        %1854 = vmatprep.subr.bf16.mxu0 0
        %1855 = vmatpush1.bf16.msra.mxu0 0
        %1856 = vmatprep.subr.bf16.mxu0 0
        %1857 = vmatpush1.bf16.msra.mxu0 0
        %1858 = vmatprep.subr.bf16.mxu0 0
        %1859 = vmatpush1.bf16.msra.mxu0 0
        %1860 = vmatprep.subr.bf16.mxu0 0
        %1861 = vmatpush1.bf16.msra.mxu0 0
        %1862 = vmatprep.subr.bf16.mxu0 0
        %1863 = vmatpush1.bf16.msra.mxu0 0
        %1864 = vmatprep.subr.bf16.mxu0 0
        %1865 = vmatpush1.bf16.msra.mxu0 0
        %1866 = vmatprep.mubr.bf16.mxu0 0
        %1867 = vmatmul.mubr.bf16.gmra.mrb[0].mxu0 %v1832
        %v1868 = vpop.f32.mrb[0].mxu0
        %v1869 = vadd.f32 0.0, %v1868
        %v1870 = vpop.f32.mrb[0].mxu0
        %v1871 = vpop.f32.mrb[0].mxu0
        %v1872 = vpop.f32.mrb[0].mxu0
        %1873 = vdwg.mxu0
        %v1874 = vld [vmem:[%s14] sm:$0x1]
        %v1876 = vlaneseq
        %v1877 = vshrl.u32 %v1876, 7
        %v1878 = vsub.s32 0, %v1877
        %v1879 = vrot.slane %v1874, %v1878
        %v1881 = vadd.f32 %v1869, %v1879
        %v1882 = vpack.c.bf16 %v1869, %v1869
        %v1883 = vld [vmem:[%s15] sm:$0xf]
        %v1884 = vld [vmem:[%s15 + $0x4] sm:$0xf]
        %1886 = vrot.lane.b32.xlu0 %v1882, 96
        %v1887 = vpop.permute.xlu0 %1886
        %v1890 = vunpack.c.l.b16 %v1883
        %v1891 = vunpack.c.l.b16 %v1884
        %v1892 = vpack.c.b16 %v1891, %v1890
        %v1895 = vsel %vm652, %v1887, 0
        %1897 = vmatprep.subr.bf16.mxu0 0
        %1898 = vmatpush1.bf16.msra.mxu0 %v1892
        %1899 = vmatprep.subr.bf16.mxu0 0
        %1900 = vmatpush1.bf16.msra.mxu0 0
        %1901 = vmatprep.subr.bf16.mxu0 0
        %1902 = vmatpush1.bf16.msra.mxu0 0
        %1903 = vmatprep.subr.bf16.mxu0 0
        %1904 = vmatpush1.bf16.msra.mxu0 0
        %1905 = vmatprep.subr.bf16.mxu0 0
        %1906 = vmatpush1.bf16.msra.mxu0 0
        %1907 = vmatprep.subr.bf16.mxu0 0
        %1908 = vmatpush1.bf16.msra.mxu0 0
        %1909 = vmatprep.subr.bf16.mxu0 0
        %1910 = vmatpush1.bf16.msra.mxu0 0
        %1911 = vmatprep.subr.bf16.mxu0 0
        %1912 = vmatpush1.bf16.msra.mxu0 0
        %1913 = vmatprep.subr.bf16.mxu0 0
        %1914 = vmatpush1.bf16.msra.mxu0 0
        %1915 = vmatprep.subr.bf16.mxu0 0
        %1916 = vmatpush1.bf16.msra.mxu0 0
        %1917 = vmatprep.subr.bf16.mxu0 0
        %1918 = vmatpush1.bf16.msra.mxu0 0
        %1919 = vmatprep.subr.bf16.mxu0 0
        %1920 = vmatpush1.bf16.msra.mxu0 0
        %1921 = vmatprep.subr.bf16.mxu0 0
        %1922 = vmatpush1.bf16.msra.mxu0 0
        %1923 = vmatprep.subr.bf16.mxu0 0
        %1924 = vmatpush1.bf16.msra.mxu0 0
        %1925 = vmatprep.subr.bf16.mxu0 0
        %1926 = vmatpush1.bf16.msra.mxu0 0
        %1927 = vmatprep.subr.bf16.mxu0 0
        %1928 = vmatpush1.bf16.msra.mxu0 0
        %1929 = vmatprep.mubr.bf16.mxu0 0
        %1930 = vmatmul.mubr.bf16.gmra.mrb[0].mxu0 %v1895
        %v1931 = vpop.f32.mrb[0].mxu0
        %v1932 = vadd.f32 0.0, %v1931
        %v1933 = vpop.f32.mrb[0].mxu0
        %v1934 = vpop.f32.mrb[0].mxu0
        %v1935 = vpop.f32.mrb[0].mxu0
        %1936 = vdwg.mxu0
        %v1937 = vadd.f32 %v1881, %v1932
        %v1938 = vadd.f32 %v564, %v1937
        %1939 = vst.msk [vmem:[%s553] sm:$0xff] %vm590, %v1938
        %s1940 = sand.u32 %s398, 1
        %s1941 = scalar_lea.sflag [#allocation10], %s1940
        %s1942 = sand.u32 %s398, 1
        %s1943 = smul.addr %s1942, 8
        %s1944 = scalar_lea.vmem [#allocation11], %s1943
        // Predicated region
        $region93: #{tpu_custom_call.1} parent=83 // pred_check
          %p1945 = pneg %p408
        $region94: #{tpu_custom_call.1} parent=83 // pred_check_branch
          %1947 = sbr.rel (%p1945) target = $region96
        $region95: #{tpu_custom_call.1} parent=83 // pred_region
          %s1949 = ssub.s32 128, 128
          %1950 = vsyncadd %s1941, %s1949
          %s1951 = sadd.s32 %s38, %s37
          %s1952 = smul.addr %s1951, 128
          %s1953 = scalar_lea.hbm %s16, %s1952
          %s1955 = sshll.u32 %s1944, 4
          %s1956 = int_to_ptr.vmem [resolvable:$true] %s1955
          %1958 = dma.vmem_to_hbm [thread:$0]  %s1956, 128, %s1953, %s1941
        $region96: #{tpu_custom_call.1} parent=83 // pred_fallthru
          _
      $region84: #{tpu_custom_call.1} parent=5 // pred_fallthru
        _
      %p1959 = scmp.le.s32.totalorder 2, %s28
      // Predicated region
      $region97: #{tpu_custom_call.1} parent=5 // pred_check
        %p1960 = pneg %p1959
      $region98: #{tpu_custom_call.1} parent=5 // pred_check_branch
        %1962 = sbr.rel (%p1960) target = $region100
      $region99: #{tpu_custom_call.1} parent=5 // pred_region
        %s1963 = ssub.s32 %s28, 2
        // Predicated region
        $region101: #{tpu_custom_call.1} parent=99 // pred_check
          %p1964 = pneg %p414
        $region102: #{tpu_custom_call.1} parent=99 // pred_check_branch
          %1966 = sbr.rel (%p1964) target = $region104
        $region103: #{tpu_custom_call.1} parent=99 // pred_region
          %s1967 = sand.u32 %s399, 1
          %s1968 = scalar_lea.sflag [#allocation10], %s1967
          %s1969 = sand.u32 %s399, 1
          %s1970 = smul.addr %s1969, 8
          %s1971 = scalar_lea.vmem [#allocation11], %s1970
          %1972 = dma.done %s1968, 128
        $region104: #{tpu_custom_call.1} parent=99 // pred_fallthru
          _
      $region100: #{tpu_custom_call.1} parent=5 // pred_fallthru
        _
    $region6: #{tpu_custom_call.1} parent=1 // loop_footer
      %s32 = sadd.s32 1, %s28
    $region7: #{tpu_custom_call.1} parent=1 // loop_footer_branch
      %27 = sbr.rel target = $region3
    $region8: #{tpu_custom_call.1} parent=1 // loop_exit
      _
    %1973 = vsyncpa [#allocation9], 1
    %s1974 = scalar_lea.sflag [#allocation9], 1
    %1975 = vsyncpa %s1974, 1
    %1976 = vsyncpa [#allocation10], 1
    %s1977 = scalar_lea.sflag [#allocation10], 1
    %1978 = vsyncpa %s1977, 1

</llo_original>
